<compile_context>
chip_gen: v7x
topology: tpu7x:2x2x1
jax: 0.10.0
libtpu: 0.0.40
codegen_flags: <defaults>
</compile_context>

<pallas_src>
import functools

import jax
import jax.numpy as jnp
from jax.experimental import pallas as pl
from jax.experimental.pallas import tpu as pltpu


def _edge_agg_kernel(ed_ref, h_ref, ori_ref, w1_ref, b1_ref, sel_ref, w2_ref,
                     b2_ref, out_ref, oriw1_ref, accn_ref, acce_ref, *,
                     mxu_dtype):
    # Optional cast of MXU operands only (accumulation stays f32 throughout).
    if mxu_dtype is None:
        mx = lambda x: x
    else:
        mx = lambda x: x.astype(mxu_dtype)

    e = pl.program_id(1)
    last_e = pl.num_programs(1) - 1

    bpb, Et, N = h_ref.shape          # batch-per-block, edge tile, nodes
    D = ori_ref.shape[-1]
    TH = w1_ref.shape[-1]             # T * HID (packed hidden width)

    @pl.when(e == 0)
    def _init():
        # Cache ori @ W1_packed for this batch block (invariant across E tiles).
        ori2 = ori_ref[...].reshape(bpb * N, D)                  # leading-dim reshape
        ow = jnp.dot(mx(ori2), mx(w1_ref[...]),
                     preferred_element_type=jnp.float32)          # (bpb*N, TH)
        oriw1_ref[...] = ow.reshape(bpb, N, TH)
        accn_ref[...] = jnp.zeros_like(accn_ref)
        acce_ref[...] = jnp.zeros_like(acce_ref)

    Hm = h_ref[...]                     # (bpb, Et, N)
    ed = ed_ref[...]                    # (bpb, Et, T)

    # First layer, reassociated: h1 = relu(H_tile @ (ori @ W1p) + b1p).
    # Lane-dense TH-wide output instead of a D=32-wide `edges` intermediate.
    h1 = jnp.einsum('ben,bnk->bek', mx(Hm), mx(oriw1_ref[...]),
                    preferred_element_type=jnp.float32)          # (bpb, Et, TH)
    h1 = jnp.maximum(h1 + b1_ref[...], 0.0)                      # bias + ReLU in f32

    # Expand per-type mixture weights to the packed lane layout via the 0/1
    # selector matmul (exact in bf16): ed_exp[., t*HID + h] == ed[., t].
    ed2 = ed.reshape(bpb * Et, ed.shape[-1])
    ed_exp = jnp.dot(mx(ed2), mx(sel_ref[...]),
                     preferred_element_type=jnp.float32).reshape(bpb, Et, TH)
    h1w = h1 * ed_exp                                            # f32 weighting

    # Accumulate the node-side contractions over the edge axis (TH-wide, K = Et).
    # TODO(synk): if vxpose ever shows on the critical path here, feed a
    # wrapper-precomputed H^T (B, N, E) for these two contractions instead.
    accn_ref[...] += jnp.einsum('ben,bek->bnk', mx(Hm), mx(h1w),
                                preferred_element_type=jnp.float32)
    acce_ref[...] += jnp.einsum('ben,bet->bnt', mx(Hm), mx(ed),
                                preferred_element_type=jnp.float32)

    @pl.when(e == last_e)
    def _finalize():
        accn2 = accn_ref[...].reshape(bpb * N, TH)
        acce2 = acce_ref[...].reshape(bpb * N, acce_ref.shape[-1])
        node = jnp.dot(mx(accn2), mx(w2_ref[...]),
                       preferred_element_type=jnp.float32)        # (bpb*N, D)
        node = node + jnp.dot(mx(acce2), mx(b2_ref[...]),
                              preferred_element_type=jnp.float32)  # + sum_t ed_t*b2_t
        node3 = node.reshape(bpb, N, D).astype(out_ref.dtype)
        # Lane-dense (bpb, 1, N*D) writeback block (static slice stores avoid any
        # risky minor-dim reshape); the wrapper reshapes back to (B, N, D).
        for n in range(N):
            out_ref[:, 0, n * D:(n + 1) * D] = node3[:, n, :]


def edge_aggregation_pallas(edge_distribution, H, ori, params, *,
                            batch_tiles=1, e_tile=None,
                            mxu_dtype=jnp.bfloat16, vmem_limit_bytes=None):
    """params = (W1, b1, W2, b2) with shapes
       W1: (T, D, HID), b1: (T, 1, HID), W2: (T, HID, D), b2: (T, 1, D)."""
    W1, b1, W2, b2 = params
    B, E, T = edge_distribution.shape
    _, N, D = ori.shape
    HID = W1.shape[-1]
    TH = T * HID

    assert B % batch_tiles == 0, "batch_tiles must divide the batch size"
    bpb = B // batch_tiles

    if e_tile is None:
        # Bound the per-step (bpb*e_tile, T*HID) f32 intermediates (h1, ed_exp,
        # h1w) to a few MiB: fits v7x's 64 MiB VMEM with double-buffered inputs
        # and leaves the E axis multiple pipeline steps to hide DMA.
        budget_rows = max(8, (6 * 1024 * 1024) // (3 * 4 * TH * max(bpb, 1)))
        e_tile = E
        while (e_tile > budget_rows and e_tile % 2 == 0
               and (e_tile // 2) % 8 == 0):
            e_tile //= 2
    assert E % e_tile == 0, "e_tile must divide E"
    assert e_tile == E or e_tile % 8 == 0, "partial E tiles must be sublane-aligned"
    ge = E // e_tile

    # Pack the T per-type MLP weights into single lane-dense operands.
    W1p = jnp.transpose(W1, (1, 0, 2)).reshape(D, TH)   # W1p[d, t*HID+h] = W1[t,d,h]
    b1p = b1.reshape(1, TH)                             # b1p[0, t*HID+h] = b1[t,0,h]
    W2p = W2.reshape(TH, D)                             # W2p[t*HID+h, d] = W2[t,h,d]
    b2f = b2.reshape(T, D)
    # 0/1 selector expanding per-type weights to the packed lane layout.
    sel = jnp.repeat(jnp.eye(T, dtype=jnp.float32), HID, axis=1)   # (T, TH)

    kernel = functools.partial(_edge_agg_kernel, mxu_dtype=mxu_dtype)

    flops = B * (2 * N * D * TH                     # ori @ W1p (cached per batch)
                 + E * (2 * N * TH                  # H_tile @ oriW1
                        + 2 * T * TH                # selector expansion
                        + 2 * N * TH                # H^T @ h1w accumulation
                        + 2 * N * T)                # H^T @ ed accumulation
                 + 2 * N * TH * D + 2 * N * T * D)  # final projections
    bytes_accessed = 4 * (edge_distribution.size + H.size + ori.size
                          + W1p.size + b1p.size + sel.size + W2p.size + b2f.size
                          + B * N * D)

    if vmem_limit_bytes is None:
        # Above v5e's 16 MiB / v6e-v7x's 32 MiB default scoped limits, with
        # headroom below v7x's 64 MiB physical VMEM. The e_tile budget keeps
        # actual usage far under this.
        vmem_limit_bytes = 48 * 1024 * 1024

    node_flat = pl.pallas_call(
        kernel,
        out_shape=jax.ShapeDtypeStruct((B, 1, N * D), ori.dtype),
        grid=(batch_tiles, ge),
        in_specs=[
            pl.BlockSpec((bpb, e_tile, T), lambda b, e: (b, e, 0)),   # edge_distribution
            pl.BlockSpec((bpb, e_tile, N), lambda b, e: (b, e, 0)),   # H
            pl.BlockSpec((bpb, N, D), lambda b, e: (b, 0, 0)),        # ori
            # Invariant packed weights (constant index_map -> fetched once).
            # TODO(synk): pipeline_mode=pl.Buffered(1) would drop their second
            # buffer (~small VMEM headroom); left default for lowering safety.
            pl.BlockSpec((D, TH), lambda b, e: (0, 0)),               # packed W1
            pl.BlockSpec((1, TH), lambda b, e: (0, 0)),               # packed b1
            pl.BlockSpec((T, TH), lambda b, e: (0, 0)),               # ed selector
            pl.BlockSpec((TH, D), lambda b, e: (0, 0)),               # packed W2
            pl.BlockSpec((T, D), lambda b, e: (0, 0)),                # packed b2
        ],
        out_specs=pl.BlockSpec((bpb, 1, N * D), lambda b, e: (b, 0, 0)),
        scratch_shapes=[
            pltpu.VMEM((bpb, N, TH), jnp.float32),   # cached ori @ W1p
            pltpu.VMEM((bpb, N, TH), jnp.float32),   # node accumulator (packed)
            pltpu.VMEM((bpb, N, T), jnp.float32),    # node-side ed accumulator
        ],
        compiler_params=pltpu.CompilerParams(
            dimension_semantics=("parallel", "arbitrary"),
            vmem_limit_bytes=int(vmem_limit_bytes)),
        cost_estimate=pl.CostEstimate(flops=flops, transcendentals=0,
                                      bytes_accessed=bytes_accessed),
    )(edge_distribution, H, ori, W1p, b1p, sel, W2p, b2f)

    node_agg = node_flat.reshape(B, N, D)
    # Concat with ori is pure layout work; doing it outside the kernel avoids
    # routing ori HBM->VMEM->HBM and halves the kernel's HBM writeback.
    return jnp.concatenate([node_agg, ori], axis=-1)


def edge_aggregation_reference(edge_distribution, H, ori, params):
    """Pure-JAX reference mirroring the PyTorch forward (per-type loop)."""
    W1, b1, W2, b2 = params
    T = edge_distribution.shape[-1]
    edges = jnp.einsum('ben,bnd->bed', H, ori)
    edge_feature = jnp.zeros_like(edges)
    for i in range(T):
        h1 = jnp.maximum(edges @ W1[i] + b1[i], 0.0)
        oi = h1 @ W2[i] + b2[i]
        edge_feature = edge_feature + edge_distribution[:, :, i:i + 1] * oi
    node_agg = jnp.einsum('ben,bed->bnd', H, edge_feature)
    return jnp.concatenate([node_agg, ori], axis=-1)


def make_params(key, input_dim, hidden, edge_types):
    """Deterministic synthetic weights for the T per-type MLPs
    (Linear(D, hidden) -> ReLU -> Linear(hidden, D))."""
    ks = jax.random.split(key, 4)
    W1 = jax.random.normal(ks[0], (edge_types, input_dim, hidden), jnp.float32) * 0.05
    b1 = jax.random.normal(ks[1], (edge_types, 1, hidden), jnp.float32) * 0.05
    W2 = jax.random.normal(ks[2], (edge_types, hidden, input_dim), jnp.float32) * 0.05
    b2 = jax.random.normal(ks[3], (edge_types, 1, input_dim), jnp.float32) * 0.05
    return W1, b1, W2, b2


if __name__ == "__main__":
    B, E, N, D, T, HID = 2, 16, 8, 32, 5, 128

    key = jax.random.PRNGKey(0)
    k_ed, k_h, k_ori, k_p = jax.random.split(key, 4)

    edge_distribution = jax.nn.softmax(
        jax.random.normal(k_ed, (B, E, T), jnp.float32), axis=-1)
    H = (jax.random.uniform(k_h, (B, E, N)) > 0.5).astype(jnp.float32)
    ori = jax.random.normal(k_ori, (B, N, D), jnp.float32)
    params = make_params(k_p, D, HID, T)

    ref = edge_aggregation_reference(edge_distribution, H, ori, params)

    # Default path: bf16 MXU operands, single batch block, E tiled into 2
    # "arbitrary" steps (exercises the zero-init / accumulate / finalize chain).
    out = jax.block_until_ready(
        edge_aggregation_pallas(edge_distribution, H, ori, params, e_tile=8))
    assert out.shape == (B, N, 2 * D)
    assert jnp.allclose(out, ref, atol=3e-2, rtol=3e-2), "mismatch (bf16, e-tiled)"

    # Pure-f32 MXU path, tight tolerance, same E tiling.
    out_f32 = jax.block_until_ready(
        edge_aggregation_pallas(edge_distribution, H, ori, params,
                                e_tile=8, mxu_dtype=None))
    assert jnp.allclose(out_f32, ref, atol=1e-4, rtol=1e-4), "mismatch (f32, e-tiled)"

    # Batch-parallel grid (v7x-style 2-way split of the "parallel" axis),
    # default E tile (single E step), f32 for a tight check.
    out_bt = jax.block_until_ready(
        edge_aggregation_pallas(edge_distribution, H, ori, params,
                                batch_tiles=2, mxu_dtype=None))
    assert jnp.allclose(out_bt, ref, atol=1e-4, rtol=1e-4), "mismatch (batch_tiles=2)"

    print("KERNEL_OK")
</pallas_src>

<mosaic_0001>
module attributes {stable_mosaic.version = 11 : i64} {
  func.func @_edge_agg_kernel(%arg0: i32, %arg1: i32, %arg2: memref<2x8x5xf32, #tpu.memory_space<vmem>>, %arg3: memref<2x8x8xf32, #tpu.memory_space<vmem>>, %arg4: memref<2x8x32xf32, #tpu.memory_space<vmem>>, %arg5: memref<32x640xf32, #tpu.memory_space<vmem>>, %arg6: memref<1x640xf32, #tpu.memory_space<vmem>>, %arg7: memref<5x640xf32, #tpu.memory_space<vmem>>, %arg8: memref<640x32xf32, #tpu.memory_space<vmem>>, %arg9: memref<5x32xf32, #tpu.memory_space<vmem>>, %arg10: memref<2x1x256xf32, #tpu.memory_space<vmem>>, %arg11: memref<2x8x640xf32, #tpu.memory_space<vmem>>, %arg12: memref<2x8x640xf32, #tpu.memory_space<vmem>>, %arg13: memref<2x8x5xf32, #tpu.memory_space<vmem>>) attributes {dimension_semantics = [#tpu.dimension_semantics<parallel>, #tpu.dimension_semantics<arbitrary>], iteration_bounds = array<i64: 1, 2>, scalar_prefetch = 0 : i64, scratch_operands = 3 : i64, tpu.core_type = #tpu.core_type<tc>, window_params = [{transform_indices = @transform_0, window_bounds = array<i64: 2, 8, 5>}, {transform_indices = @transform_1, window_bounds = array<i64: 2, 8, 8>}, {transform_indices = @transform_2, window_bounds = array<i64: 2, 8, 32>}, {pipeline_mode = #tpu.pipeline_mode<synchronous>, transform_indices = @transform_3, window_bounds = array<i64: 32, 640>}, {pipeline_mode = #tpu.pipeline_mode<synchronous>, transform_indices = @transform_4, window_bounds = array<i64: 1, 640>}, {pipeline_mode = #tpu.pipeline_mode<synchronous>, transform_indices = @transform_5, window_bounds = array<i64: 5, 640>}, {pipeline_mode = #tpu.pipeline_mode<synchronous>, transform_indices = @transform_6, window_bounds = array<i64: 640, 32>}, {pipeline_mode = #tpu.pipeline_mode<synchronous>, transform_indices = @transform_7, window_bounds = array<i64: 5, 32>}, {transform_indices = @transform_8, window_bounds = array<i64: 2, 1, 256>}]} {
    %c0_i32 = arith.constant 0 : i32
    %0 = arith.cmpi eq, %arg1, %c0_i32 : i32
    %1 = arith.extui %0 : i1 to i32
    %c0_i32_0 = arith.constant 0 : i32
    %2 = arith.cmpi ne, %1, %c0_i32_0 : i32
    scf.if %2 {
      %c0_30 = arith.constant 0 : index
      %c0_31 = arith.constant 0 : index
      %c0_32 = arith.constant 0 : index
      %37 = vector.load %arg4[%c0_30, %c0_31, %c0_32] : memref<2x8x32xf32, #tpu.memory_space<vmem>>, vector<2x8x32xf32>
      %38 = vector.shape_cast %37 : vector<2x8x32xf32> to vector<16x32xf32>
      %39 = arith.truncf %38 : vector<16x32xf32> to vector<16x32xbf16>
      %c0_33 = arith.constant 0 : index
      %c0_34 = arith.constant 0 : index
      %40 = vector.load %arg5[%c0_33, %c0_34] : memref<32x640xf32, #tpu.memory_space<vmem>>, vector<32x640xf32>
      %41 = arith.truncf %40 : vector<32x640xf32> to vector<32x640xbf16>
      %cst_35 = arith.constant dense<0.000000e+00> : vector<16x640xf32>
      %42 = tpu.matmul %39, %41, %cst_35 {dimension_numbers = #tpu.dot_dimension_numbers<[1], [0], [0], [1], [0, 0, 1, 1], [], []>} : vector<16x32xbf16>, vector<32x640xbf16>, vector<16x640xf32> -> vector<16x640xf32>
      %43 = vector.shape_cast %42 : vector<16x640xf32> to vector<2x8x640xf32>
      %c0_36 = arith.constant 0 : index
      %c0_37 = arith.constant 0 : index
      %c0_38 = arith.constant 0 : index
      %44 = vector.load %arg11[%c0_36, %c0_37, %c0_38] : memref<2x8x640xf32, #tpu.memory_space<vmem>>, vector<2x8x640xf32>
      tpu.vector_store %arg11[%c0_36, %c0_37, %c0_38], %43 {strides = array<i32>} : memref<2x8x640xf32, #tpu.memory_space<vmem>>, vector<2x8x640xf32>,
      %cst_39 = arith.constant 0.000000e+00 : f32
      %45 = vector.broadcast %cst_39 : f32 to vector<2x8x640xf32>
      %c0_40 = arith.constant 0 : index
      %c0_41 = arith.constant 0 : index
      %c0_42 = arith.constant 0 : index
      %46 = vector.load %arg12[%c0_40, %c0_41, %c0_42] : memref<2x8x640xf32, #tpu.memory_space<vmem>>, vector<2x8x640xf32>
      tpu.vector_store %arg12[%c0_40, %c0_41, %c0_42], %45 {strides = array<i32>} : memref<2x8x640xf32, #tpu.memory_space<vmem>>, vector<2x8x640xf32>,
      %cst_43 = arith.constant 0.000000e+00 : f32
      %47 = vector.broadcast %cst_43 : f32 to vector<2x8x5xf32>
      %c0_44 = arith.constant 0 : index
      %c0_45 = arith.constant 0 : index
      %c0_46 = arith.constant 0 : index
      %48 = vector.load %arg13[%c0_44, %c0_45, %c0_46] : memref<2x8x5xf32, #tpu.memory_space<vmem>>, vector<2x8x5xf32>
      tpu.vector_store %arg13[%c0_44, %c0_45, %c0_46], %47 {strides = array<i32>} : memref<2x8x5xf32, #tpu.memory_space<vmem>>, vector<2x8x5xf32>,
    } else {
    }
    %c0 = arith.constant 0 : index
    %c0_1 = arith.constant 0 : index
    %c0_2 = arith.constant 0 : index
    %3 = vector.load %arg3[%c0, %c0_1, %c0_2] : memref<2x8x8xf32, #tpu.memory_space<vmem>>, vector<2x8x8xf32>
    %c0_3 = arith.constant 0 : index
    %c0_4 = arith.constant 0 : index
    %c0_5 = arith.constant 0 : index
    %4 = vector.load %arg2[%c0_3, %c0_4, %c0_5] : memref<2x8x5xf32, #tpu.memory_space<vmem>>, vector<2x8x5xf32>
    %5 = arith.truncf %3 : vector<2x8x8xf32> to vector<2x8x8xbf16>
    %c0_6 = arith.constant 0 : index
    %c0_7 = arith.constant 0 : index
    %c0_8 = arith.constant 0 : index
    %6 = vector.load %arg11[%c0_6, %c0_7, %c0_8] : memref<2x8x640xf32, #tpu.memory_space<vmem>>, vector<2x8x640xf32>
    %7 = arith.truncf %6 : vector<2x8x640xf32> to vector<2x8x640xbf16>
    "tpu.trace_start"() <{level = 10 : i32, message = "ben,bnk->bek"}> : () -> ()
    %cst = arith.constant dense<0.000000e+00> : vector<2x8x640xf32>
    %8 = tpu.matmul %5, %7, %cst {dimension_numbers = #tpu.dot_dimension_numbers<[2], [1], [1], [2], [0, 0, 0, 1, 1, 2], [0], [0]>} : vector<2x8x8xbf16>, vector<2x8x640xbf16>, vector<2x8x640xf32> -> vector<2x8x640xf32>
    "tpu.trace_stop"() : () -> ()
    %c0_9 = arith.constant 0 : index
    %c0_10 = arith.constant 0 : index
    %9 = vector.load %arg6[%c0_9, %c0_10] : memref<1x640xf32, #tpu.memory_space<vmem>>, vector<1x640xf32>
    %10 = vector.shape_cast %9 : vector<1x640xf32> to vector<1x1x640xf32>
    %11 = vector.broadcast %10 : vector<1x1x640xf32> to vector<2x8x640xf32>
    %12 = arith.addf %8, %11 : vector<2x8x640xf32>
    %cst_11 = arith.constant 0.000000e+00 : f32
    %13 = vector.broadcast %cst_11 : f32 to vector<2x8x640xf32>
    %14 = arith.maximumf %12, %13 : vector<2x8x640xf32>
    %15 = vector.shape_cast %4 : vector<2x8x5xf32> to vector<16x5xf32>
    %16 = arith.truncf %15 : vector<16x5xf32> to vector<16x5xbf16>
    %c0_12 = arith.constant 0 : index
    %c0_13 = arith.constant 0 : index
    %17 = vector.load %arg7[%c0_12, %c0_13] : memref<5x640xf32, #tpu.memory_space<vmem>>, vector<5x640xf32>
    %18 = arith.truncf %17 : vector<5x640xf32> to vector<5x640xbf16>
    %cst_14 = arith.constant dense<0.000000e+00> : vector<16x640xf32>
    %19 = tpu.matmul %16, %18, %cst_14 {dimension_numbers = #tpu.dot_dimension_numbers<[1], [0], [0], [1], [0, 0, 1, 1], [], []>} : vector<16x5xbf16>, vector<5x640xbf16>, vector<16x640xf32> -> vector<16x640xf32>
    %20 = vector.shape_cast %19 : vector<16x640xf32> to vector<2x8x640xf32>
    %21 = arith.mulf %14, %20 : vector<2x8x640xf32>
    %c0_15 = arith.constant 0 : index
    %c0_16 = arith.constant 0 : index
    %c0_17 = arith.constant 0 : index
    %22 = vector.load %arg12[%c0_15, %c0_16, %c0_17] : memref<2x8x640xf32, #tpu.memory_space<vmem>>, vector<2x8x640xf32>
    %23 = arith.truncf %3 : vector<2x8x8xf32> to vector<2x8x8xbf16>
    %24 = arith.truncf %21 : vector<2x8x640xf32> to vector<2x8x640xbf16>
    "tpu.trace_start"() <{level = 10 : i32, message = "ben,bek->bnk"}> : () -> ()
    %cst_18 = arith.constant dense<0.000000e+00> : vector<2x8x640xf32>
    %25 = tpu.matmul %23, %24, %cst_18 {dimension_numbers = #tpu.dot_dimension_numbers<[1], [1], [2], [2], [0, 0, 0, 2, 1, 2], [0], [0]>} : vector<2x8x8xbf16>, vector<2x8x640xbf16>, vector<2x8x640xf32> -> vector<2x8x640xf32>
    "tpu.trace_stop"() : () -> ()
    %26 = arith.addf %22, %25 : vector<2x8x640xf32>
    %c0_19 = arith.constant 0 : index
    %c0_20 = arith.constant 0 : index
    %c0_21 = arith.constant 0 : index
    %27 = vector.load %arg12[%c0_19, %c0_20, %c0_21] : memref<2x8x640xf32, #tpu.memory_space<vmem>>, vector<2x8x640xf32>
    tpu.vector_store %arg12[%c0_19, %c0_20, %c0_21], %26 {strides = array<i32>} : memref<2x8x640xf32, #tpu.memory_space<vmem>>, vector<2x8x640xf32>,
    %c0_22 = arith.constant 0 : index
    %c0_23 = arith.constant 0 : index
    %c0_24 = arith.constant 0 : index
    %28 = vector.load %arg13[%c0_22, %c0_23, %c0_24] : memref<2x8x5xf32, #tpu.memory_space<vmem>>, vector<2x8x5xf32>
    %29 = arith.truncf %3 : vector<2x8x8xf32> to vector<2x8x8xbf16>
    %30 = arith.truncf %4 : vector<2x8x5xf32> to vector<2x8x5xbf16>
    "tpu.trace_start"() <{level = 10 : i32, message = "ben,bet->bnt"}> : () -> ()
    %cst_25 = arith.constant dense<0.000000e+00> : vector<2x8x5xf32>
    %31 = tpu.matmul %29, %30, %cst_25 {dimension_numbers = #tpu.dot_dimension_numbers<[1], [1], [2], [2], [0, 0, 0, 2, 1, 2], [0], [0]>} : vector<2x8x8xbf16>, vector<2x8x5xbf16>, vector<2x8x5xf32> -> vector<2x8x5xf32>
    "tpu.trace_stop"() : () -> ()
    %32 = arith.addf %28, %31 : vector<2x8x5xf32>
    %c0_26 = arith.constant 0 : index
    %c0_27 = arith.constant 0 : index
    %c0_28 = arith.constant 0 : index
    %33 = vector.load %arg13[%c0_26, %c0_27, %c0_28] : memref<2x8x5xf32, #tpu.memory_space<vmem>>, vector<2x8x5xf32>
    tpu.vector_store %arg13[%c0_26, %c0_27, %c0_28], %32 {strides = array<i32>} : memref<2x8x5xf32, #tpu.memory_space<vmem>>, vector<2x8x5xf32>,
    %c1_i32 = arith.constant 1 : i32
    %34 = arith.cmpi eq, %arg1, %c1_i32 : i32
    %35 = arith.extui %34 : i1 to i32
    %c0_i32_29 = arith.constant 0 : i32
    %36 = arith.cmpi ne, %35, %c0_i32_29 : i32
    scf.if %36 {
      %c0_30 = arith.constant 0 : index
      %c0_31 = arith.constant 0 : index
      %c0_32 = arith.constant 0 : index
      %37 = vector.load %arg12[%c0_30, %c0_31, %c0_32] : memref<2x8x640xf32, #tpu.memory_space<vmem>>, vector<2x8x640xf32>
      %38 = vector.shape_cast %37 : vector<2x8x640xf32> to vector<16x640xf32>
      %c0_33 = arith.constant 0 : index
      %c0_34 = arith.constant 0 : index
      %c0_35 = arith.constant 0 : index
      %39 = vector.load %arg13[%c0_33, %c0_34, %c0_35] : memref<2x8x5xf32, #tpu.memory_space<vmem>>, vector<2x8x5xf32>
      %40 = vector.shape_cast %39 : vector<2x8x5xf32> to vector<16x5xf32>
      %41 = arith.truncf %38 : vector<16x640xf32> to vector<16x640xbf16>
      %c0_36 = arith.constant 0 : index
      %c0_37 = arith.constant 0 : index
      %42 = vector.load %arg8[%c0_36, %c0_37] : memref<640x32xf32, #tpu.memory_space<vmem>>, vector<640x32xf32>
      %43 = arith.truncf %42 : vector<640x32xf32> to vector<640x32xbf16>
      %cst_38 = arith.constant dense<0.000000e+00> : vector<16x32xf32>
      %44 = tpu.matmul %41, %43, %cst_38 {dimension_numbers = #tpu.dot_dimension_numbers<[1], [0], [0], [1], [0, 0, 1, 1], [], []>} : vector<16x640xbf16>, vector<640x32xbf16>, vector<16x32xf32> -> vector<16x32xf32>
      %45 = arith.truncf %40 : vector<16x5xf32> to vector<16x5xbf16>
      %c0_39 = arith.constant 0 : index
      %c0_40 = arith.constant 0 : index
      %46 = vector.load %arg9[%c0_39, %c0_40] : memref<5x32xf32, #tpu.memory_space<vmem>>, vector<5x32xf32>
      %47 = arith.truncf %46 : vector<5x32xf32> to vector<5x32xbf16>
      %cst_41 = arith.constant dense<0.000000e+00> : vector<16x32xf32>
      %48 = tpu.matmul %45, %47, %cst_41 {dimension_numbers = #tpu.dot_dimension_numbers<[1], [0], [0], [1], [0, 0, 1, 1], [], []>} : vector<16x5xbf16>, vector<5x32xbf16>, vector<16x32xf32> -> vector<16x32xf32>
      %49 = arith.addf %44, %48 : vector<16x32xf32>
      %50 = vector.shape_cast %49 : vector<16x32xf32> to vector<2x8x32xf32>
      %51 = vector.extract_strided_slice %50 {offsets = [0, 0, 0], sizes = [2, 1, 32], strides = [1, 1, 1]} : vector<2x8x32xf32> to vector<2x1x32xf32>
      %52 = vector.shape_cast %51 : vector<2x1x32xf32> to vector<2x32xf32>
      %c0_42 = arith.constant 0 : index
      %c0_43 = arith.constant 0 : index
      %c0_44 = arith.constant 0 : index
      %53 = vector.load %arg10[%c0_42, %c0_43, %c0_44] : memref<2x1x256xf32, #tpu.memory_space<vmem>>, vector<2x1x32xf32>
      %54 = vector.shape_cast %53 : vector<2x1x32xf32> to vector<2x32xf32>
      %55 = vector.shape_cast %52 : vector<2x32xf32> to vector<2x1x32xf32>
      tpu.vector_store %arg10[%c0_42, %c0_43, %c0_44], %55 {strides = array<i32>} : memref<2x1x256xf32, #tpu.memory_space<vmem>>, vector<2x1x32xf32>,
      %56 = vector.extract_strided_slice %50 {offsets = [0, 1, 0], sizes = [2, 1, 32], strides = [1, 1, 1]} : vector<2x8x32xf32> to vector<2x1x32xf32>
      %57 = vector.shape_cast %56 : vector<2x1x32xf32> to vector<2x32xf32>
      %c0_45 = arith.constant 0 : index
      %c0_46 = arith.constant 0 : index
      %c32 = arith.constant 32 : index
      %58 = vector.load %arg10[%c0_45, %c0_46, %c32] : memref<2x1x256xf32, #tpu.memory_space<vmem>>, vector<2x1x32xf32>
      %59 = vector.shape_cast %58 : vector<2x1x32xf32> to vector<2x32xf32>
      %60 = vector.shape_cast %57 : vector<2x32xf32> to vector<2x1x32xf32>
      tpu.vector_store %arg10[%c0_45, %c0_46, %c32], %60 {strides = array<i32>} : memref<2x1x256xf32, #tpu.memory_space<vmem>>, vector<2x1x32xf32>,
      %61 = vector.extract_strided_slice %50 {offsets = [0, 2, 0], sizes = [2, 1, 32], strides = [1, 1, 1]} : vector<2x8x32xf32> to vector<2x1x32xf32>
      %62 = vector.shape_cast %61 : vector<2x1x32xf32> to vector<2x32xf32>
      %c0_47 = arith.constant 0 : index
      %c0_48 = arith.constant 0 : index
      %c64 = arith.constant 64 : index
      %63 = vector.load %arg10[%c0_47, %c0_48, %c64] : memref<2x1x256xf32, #tpu.memory_space<vmem>>, vector<2x1x32xf32>
      %64 = vector.shape_cast %63 : vector<2x1x32xf32> to vector<2x32xf32>
      %65 = vector.shape_cast %62 : vector<2x32xf32> to vector<2x1x32xf32>
      tpu.vector_store %arg10[%c0_47, %c0_48, %c64], %65 {strides = array<i32>} : memref<2x1x256xf32, #tpu.memory_space<vmem>>, vector<2x1x32xf32>,
      %66 = vector.extract_strided_slice %50 {offsets = [0, 3, 0], sizes = [2, 1, 32], strides = [1, 1, 1]} : vector<2x8x32xf32> to vector<2x1x32xf32>
      %67 = vector.shape_cast %66 : vector<2x1x32xf32> to vector<2x32xf32>
      %c0_49 = arith.constant 0 : index
      %c0_50 = arith.constant 0 : index
      %c96 = arith.constant 96 : index
      %68 = vector.load %arg10[%c0_49, %c0_50, %c96] : memref<2x1x256xf32, #tpu.memory_space<vmem>>, vector<2x1x32xf32>
      %69 = vector.shape_cast %68 : vector<2x1x32xf32> to vector<2x32xf32>
      %70 = vector.shape_cast %67 : vector<2x32xf32> to vector<2x1x32xf32>
      tpu.vector_store %arg10[%c0_49, %c0_50, %c96], %70 {strides = array<i32>} : memref<2x1x256xf32, #tpu.memory_space<vmem>>, vector<2x1x32xf32>,
      %71 = vector.extract_strided_slice %50 {offsets = [0, 4, 0], sizes = [2, 1, 32], strides = [1, 1, 1]} : vector<2x8x32xf32> to vector<2x1x32xf32>
      %72 = vector.shape_cast %71 : vector<2x1x32xf32> to vector<2x32xf32>
      %c0_51 = arith.constant 0 : index
      %c0_52 = arith.constant 0 : index
      %c128 = arith.constant 128 : index
      %73 = vector.load %arg10[%c0_51, %c0_52, %c128] : memref<2x1x256xf32, #tpu.memory_space<vmem>>, vector<2x1x32xf32>
      %74 = vector.shape_cast %73 : vector<2x1x32xf32> to vector<2x32xf32>
      %75 = vector.shape_cast %72 : vector<2x32xf32> to vector<2x1x32xf32>
      tpu.vector_store %arg10[%c0_51, %c0_52, %c128], %75 {strides = array<i32>} : memref<2x1x256xf32, #tpu.memory_space<vmem>>, vector<2x1x32xf32>,
      %76 = vector.extract_strided_slice %50 {offsets = [0, 5, 0], sizes = [2, 1, 32], strides = [1, 1, 1]} : vector<2x8x32xf32> to vector<2x1x32xf32>
      %77 = vector.shape_cast %76 : vector<2x1x32xf32> to vector<2x32xf32>
      %c0_53 = arith.constant 0 : index
      %c0_54 = arith.constant 0 : index
      %c160 = arith.constant 160 : index
      %78 = vector.load %arg10[%c0_53, %c0_54, %c160] : memref<2x1x256xf32, #tpu.memory_space<vmem>>, vector<2x1x32xf32>
      %79 = vector.shape_cast %78 : vector<2x1x32xf32> to vector<2x32xf32>
      %80 = vector.shape_cast %77 : vector<2x32xf32> to vector<2x1x32xf32>
      tpu.vector_store %arg10[%c0_53, %c0_54, %c160], %80 {strides = array<i32>} : memref<2x1x256xf32, #tpu.memory_space<vmem>>, vector<2x1x32xf32>,
      %81 = vector.extract_strided_slice %50 {offsets = [0, 6, 0], sizes = [2, 1, 32], strides = [1, 1, 1]} : vector<2x8x32xf32> to vector<2x1x32xf32>
      %82 = vector.shape_cast %81 : vector<2x1x32xf32> to vector<2x32xf32>
      %c0_55 = arith.constant 0 : index
      %c0_56 = arith.constant 0 : index
      %c192 = arith.constant 192 : index
      %83 = vector.load %arg10[%c0_55, %c0_56, %c192] : memref<2x1x256xf32, #tpu.memory_space<vmem>>, vector<2x1x32xf32>
      %84 = vector.shape_cast %83 : vector<2x1x32xf32> to vector<2x32xf32>
      %85 = vector.shape_cast %82 : vector<2x32xf32> to vector<2x1x32xf32>
      tpu.vector_store %arg10[%c0_55, %c0_56, %c192], %85 {strides = array<i32>} : memref<2x1x256xf32, #tpu.memory_space<vmem>>, vector<2x1x32xf32>,
      %86 = vector.extract_strided_slice %50 {offsets = [0, 7, 0], sizes = [2, 1, 32], strides = [1, 1, 1]} : vector<2x8x32xf32> to vector<2x1x32xf32>
      %87 = vector.shape_cast %86 : vector<2x1x32xf32> to vector<2x32xf32>
      %c0_57 = arith.constant 0 : index
      %c0_58 = arith.constant 0 : index
      %c224 = arith.constant 224 : index
      %88 = vector.load %arg10[%c0_57, %c0_58, %c224] : memref<2x1x256xf32, #tpu.memory_space<vmem>>, vector<2x1x32xf32>
      %89 = vector.shape_cast %88 : vector<2x1x32xf32> to vector<2x32xf32>
      %90 = vector.shape_cast %87 : vector<2x32xf32> to vector<2x1x32xf32>
      tpu.vector_store %arg10[%c0_57, %c0_58, %c224], %90 {strides = array<i32>} : memref<2x1x256xf32, #tpu.memory_space<vmem>>, vector<2x1x32xf32>,
    } else {
    }
    return
  }
  func.func @transform_0(%arg0: i32, %arg1: i32) -> (i32, i32, i32) {
    %c0_i32 = arith.constant 0 : i32
    %c0_i32_0 = arith.constant 0 : i32
    return %arg0, %arg1, %c0_i32 : i32, i32, i32
  }
  func.func @transform_1(%arg0: i32, %arg1: i32) -> (i32, i32, i32) {
    %c0_i32 = arith.constant 0 : i32
    %c0_i32_0 = arith.constant 0 : i32
    return %arg0, %arg1, %c0_i32 : i32, i32, i32
  }
  func.func @transform_2(%arg0: i32, %arg1: i32) -> (i32, i32, i32) {
    %c0_i32 = arith.constant 0 : i32
    %c0_i32_0 = arith.constant 0 : i32
    %c0_i32_1 = arith.constant 0 : i32
    return %arg0, %c0_i32, %c0_i32_0 : i32, i32, i32
  }
  func.func @transform_3(%arg0: i32, %arg1: i32) -> (i32, i32) {
    %c0_i32 = arith.constant 0 : i32
    %c0_i32_0 = arith.constant 0 : i32
    %c0_i32_1 = arith.constant 0 : i32
    return %c0_i32, %c0_i32_0 : i32, i32
  }
  func.func @transform_4(%arg0: i32, %arg1: i32) -> (i32, i32) {
    %c0_i32 = arith.constant 0 : i32
    %c0_i32_0 = arith.constant 0 : i32
    %c0_i32_1 = arith.constant 0 : i32
    return %c0_i32, %c0_i32_0 : i32, i32
  }
  func.func @transform_5(%arg0: i32, %arg1: i32) -> (i32, i32) {
    %c0_i32 = arith.constant 0 : i32
    %c0_i32_0 = arith.constant 0 : i32
    %c0_i32_1 = arith.constant 0 : i32
    return %c0_i32, %c0_i32_0 : i32, i32
  }
  func.func @transform_6(%arg0: i32, %arg1: i32) -> (i32, i32) {
    %c0_i32 = arith.constant 0 : i32
    %c0_i32_0 = arith.constant 0 : i32
    %c0_i32_1 = arith.constant 0 : i32
    return %c0_i32, %c0_i32_0 : i32, i32
  }
  func.func @transform_7(%arg0: i32, %arg1: i32) -> (i32, i32) {
    %c0_i32 = arith.constant 0 : i32
    %c0_i32_0 = arith.constant 0 : i32
    %c0_i32_1 = arith.constant 0 : i32
    return %c0_i32, %c0_i32_0 : i32, i32
  }
  func.func @transform_8(%arg0: i32, %arg1: i32) -> (i32, i32, i32) {
    %c0_i32 = arith.constant 0 : i32
    %c0_i32_0 = arith.constant 0 : i32
    %c0_i32_1 = arith.constant 0 : i32
    return %arg0, %c0_i32, %c0_i32_0 : i32, i32, i32
  }
}

</mosaic_0001>

<llo_original>
// kernel: tpu_custom_call.1
$region0: #{tpu_custom_call.1}
  #allocation0 [shape = 'u32[]', space=smem, size = 0x4, offset = 0x4, fixed_abs, tag = 'smem constant byte address 0x4 - core index']
  #allocation1 [shape = 'u32[144,128]{1,0:T(1,128)}', space=vmem, size = 0x12000, scoped, tag = 'internal scratch']
  #allocation2 [shape = 'f32[2,8,640]{2,1,0:T(8,128)}', space=vmem, size = 0xa000, scoped, tag = 'scratch operand']
  #allocation3 [shape = 'f32[2,8,640]{2,1,0:T(8,128)}', space=vmem, size = 0xa000, scoped, tag = 'scratch operand']
  #allocation4 [shape = 'f32[2,8,5]{2,1,0:T(8,128)}', space=vmem, size = 0x2000, scoped, tag = 'scratch operand']
  %s0 = inlined_call_operand.vmem [shape: f32[2,16,5], index: 0, kind: input, shape index: {}]
  %s1 = inlined_call_operand.vmem [shape: f32[2,16,8], index: 1, kind: input, shape index: {}]
  %s2 = inlined_call_operand.vmem [shape: f32[2,8,32], index: 2, kind: input, shape index: {}]
  %s3 = inlined_call_operand.vmem [shape: f32[32,640], index: 3, kind: input, shape index: {}]
  %s4 = inlined_call_operand.vmem [shape: f32[1,640], index: 4, kind: input, shape index: {}]
  %s5 = inlined_call_operand.vmem [shape: f32[5,640], index: 5, kind: input, shape index: {}]
  %s6 = inlined_call_operand.vmem [shape: f32[640,32], index: 6, kind: input, shape index: {}]
  %s7 = inlined_call_operand.vmem [shape: f32[5,32], index: 7, kind: input, shape index: {}]
  %s8 = inlined_call_operand.hbm [shape: f32[2,1,256], index: 8, kind: output, shape index: {}]
  %s9 = sld [smem:[#allocation0]]
  $region149: #{tpu_custom_call.1} parent=0
    _
  %s11 = ssub.s32 1, %s9
  %s12 = scalar_select 0, %s11, %s9
  $region1: #{tpu_custom_call.1} parent=0
    #allocation5 [shape = 'u8[16384]{0}', space=vmem, size = 0x4000, scoped, tag = 'input window, operand 0']
    #allocation6 [shape = 'u8[16384]{0}', space=vmem, size = 0x4000, scoped, tag = 'input window, operand 1']
    #allocation7 [shape = 'u8[2048]{0}', space=vmem, size = 0x800, scoped, tag = 'output window, operand 0, single buffered']
    #allocation8 [shape = 's32[2]{0}', space=sflag, size = 0x8, scoped, tag = 'scoped memory for tpu_custom_call.1']
    %13 = vsyncpa [#allocation8], 0
    loop: start=0, step=1, limit=4
    $region2: #{tpu_custom_call.1} parent=1 // loop_pre_header
      _
    $region3: #{tpu_custom_call.1} parent=1 // loop_header
      %s15 = sphi 0, %s19
      %p16 = scmp.ge.s32.totalorder %s15, 4
      %s22 = sphi 0, %s34
      %s23 = sphi 0, %s30
      %s24 = sphi 0, %s22
      %s25 = sphi 0, %s23
      %s26 = sphi 0, %s24
      %s27 = sphi 0, %s25
      %s39 = sphi 0, %s41
      %s42 = sphi 0, %s39
      %s43 = sphi 0, %s42
      %s59 = sphi 0, %s43
      %s67 = sphi 0, %s69
      %s70 = sphi 0, %s67
      %s71 = sphi 0, %s70
      %s87 = sphi 0, %s71
      %s93 = sphi 0, %s95
      %s96 = sphi 0, %s93
      %s97 = sphi 0, %s96
      %s113 = sphi 0, %s97
      %s117 = sphi 0, %s117
      %s119 = sphi 0, %s117
      %s120 = sphi 0, %s119
      %s134 = sphi 0, %s120
      %s138 = sphi 0, %s138
      %s140 = sphi 0, %s138
      %s141 = sphi 0, %s140
      %s155 = sphi 0, %s141
      %s159 = sphi 0, %s159
      %s161 = sphi 0, %s159
      %s162 = sphi 0, %s161
      %s176 = sphi 0, %s162
      %s180 = sphi 0, %s180
      %s182 = sphi 0, %s180
      %s183 = sphi 0, %s182
      %s197 = sphi 0, %s183
      %s201 = sphi 0, %s201
      %s203 = sphi 0, %s201
      %s204 = sphi 0, %s203
      %s218 = sphi 0, %s204
      %s224 = sphi 0, %s226
      %s227 = sphi 0, %s224
      %s228 = sphi 0, %s227
      %s244 = sphi 0, %s228
    $region4: #{tpu_custom_call.1} parent=1 // loop_header_branch
      %18 = sbr.rel (%p16) target = $region8
    $region5: #{tpu_custom_call.1} parent=1 // loop_body
      %s20 = ssub.s32 %s15, 1
      %s21 = ssub.s32 %s15, 2
      %s28 = sadd.s32 1, %s23
      %p29 = scmp.ge.s32.totalorder %s28, 2
      %s30 = scalar_select %p29, 0, %s28
      %s31 = sadd.s32 1, %s22
      %s32 = scalar_select %p29, %s31, %s22
      %p33 = scmp.ge.s32.totalorder %s32, 1
      %s34 = scalar_select %p33, 0, %s32
      %s35 = ssub.s32 %s22, %s34
      %s36 = ssub.s32 %s23, %s30
      %s37 = sor.u32 %s35, %s36
      %p38 = scmp.eq.s32.totalorder %s37, 0
      %s40 = sadd.s32 %s39, 1
      %s41 = scalar_select %p38, %s39, %s40
      %p44 = pneg %p38
      %p45 = scmp.eq.s32.totalorder %s15, 1
      %p46 = por %p44, %p45
      %p47 = scmp.ne.s32.totalorder %s39, %s42
      %p48 = scmp.eq.s32.totalorder %s15, 0
      %p49 = por %p47, %p48
      %p50 = scmp.ne.s32.totalorder %s39, %s42
      %p51 = scmp.eq.s32.totalorder %s20, 1
      %p52 = por %p50, %p51
      %p53 = scmp.ne.s32.totalorder %s42, %s43
      %p54 = scmp.eq.s32.totalorder %s20, 0
      %p55 = por %p53, %p54
      %p56 = scmp.ne.s32.totalorder %s42, %s43
      %p57 = scmp.eq.s32.totalorder %s21, 1
      %p58 = por %p56, %p57
      %p60 = scmp.ne.s32.totalorder %s43, %s59
      %p61 = scmp.eq.s32.totalorder %s21, 0
      %p62 = por %p60, %p61
      %s63 = ssub.s32 %s22, %s34
      %s64 = ssub.s32 %s23, %s30
      %s65 = sor.u32 %s63, %s64
      %p66 = scmp.eq.s32.totalorder %s65, 0
      %s68 = sadd.s32 %s67, 1
      %s69 = scalar_select %p66, %s67, %s68
      %p72 = pneg %p66
      %p73 = scmp.eq.s32.totalorder %s15, 1
      %p74 = por %p72, %p73
      %p75 = scmp.ne.s32.totalorder %s67, %s70
      %p76 = scmp.eq.s32.totalorder %s15, 0
      %p77 = por %p75, %p76
      %p78 = scmp.ne.s32.totalorder %s67, %s70
      %p79 = scmp.eq.s32.totalorder %s20, 1
      %p80 = por %p78, %p79
      %p81 = scmp.ne.s32.totalorder %s70, %s71
      %p82 = scmp.eq.s32.totalorder %s20, 0
      %p83 = por %p81, %p82
      %p84 = scmp.ne.s32.totalorder %s70, %s71
      %p85 = scmp.eq.s32.totalorder %s21, 1
      %p86 = por %p84, %p85
      %p88 = scmp.ne.s32.totalorder %s71, %s87
      %p89 = scmp.eq.s32.totalorder %s21, 0
      %p90 = por %p88, %p89
      %s91 = ssub.s32 %s22, %s34
      %p92 = scmp.eq.s32.totalorder %s91, 0
      %s94 = sadd.s32 %s93, 1
      %s95 = scalar_select %p92, %s93, %s94
      %p98 = pneg %p92
      %p99 = scmp.eq.s32.totalorder %s15, 1
      %p100 = por %p98, %p99
      %p101 = scmp.ne.s32.totalorder %s93, %s96
      %p102 = scmp.eq.s32.totalorder %s15, 0
      %p103 = por %p101, %p102
      %p104 = scmp.ne.s32.totalorder %s93, %s96
      %p105 = scmp.eq.s32.totalorder %s20, 1
      %p106 = por %p104, %p105
      %p107 = scmp.ne.s32.totalorder %s96, %s97
      %p108 = scmp.eq.s32.totalorder %s20, 0
      %p109 = por %p107, %p108
      %p110 = scmp.ne.s32.totalorder %s96, %s97
      %p111 = scmp.eq.s32.totalorder %s21, 1
      %p112 = por %p110, %p111
      %p114 = scmp.ne.s32.totalorder %s97, %s113
      %p115 = scmp.eq.s32.totalorder %s21, 0
      %p116 = por %p114, %p115
      %s118 = sadd.s32 %s117, 1
      %p121 = scmp.eq.s32.totalorder %s15, 1
      %p122 = scmp.ne.s32.totalorder %s117, %s119
      %p123 = scmp.eq.s32.totalorder %s15, 0
      %p124 = por %p122, %p123
      %p125 = scmp.ne.s32.totalorder %s117, %s119
      %p126 = scmp.eq.s32.totalorder %s20, 1
      %p127 = por %p125, %p126
      %p128 = scmp.ne.s32.totalorder %s119, %s120
      %p129 = scmp.eq.s32.totalorder %s20, 0
      %p130 = por %p128, %p129
      %p131 = scmp.ne.s32.totalorder %s119, %s120
      %p132 = scmp.eq.s32.totalorder %s21, 1
      %p133 = por %p131, %p132
      %p135 = scmp.ne.s32.totalorder %s120, %s134
      %p136 = scmp.eq.s32.totalorder %s21, 0
      %p137 = por %p135, %p136
      %s139 = sadd.s32 %s138, 1
      %p142 = scmp.eq.s32.totalorder %s15, 1
      %p143 = scmp.ne.s32.totalorder %s138, %s140
      %p144 = scmp.eq.s32.totalorder %s15, 0
      %p145 = por %p143, %p144
      %p146 = scmp.ne.s32.totalorder %s138, %s140
      %p147 = scmp.eq.s32.totalorder %s20, 1
      %p148 = por %p146, %p147
      %p149 = scmp.ne.s32.totalorder %s140, %s141
      %p150 = scmp.eq.s32.totalorder %s20, 0
      %p151 = por %p149, %p150
      %p152 = scmp.ne.s32.totalorder %s140, %s141
      %p153 = scmp.eq.s32.totalorder %s21, 1
      %p154 = por %p152, %p153
      %p156 = scmp.ne.s32.totalorder %s141, %s155
      %p157 = scmp.eq.s32.totalorder %s21, 0
      %p158 = por %p156, %p157
      %s160 = sadd.s32 %s159, 1
      %p163 = scmp.eq.s32.totalorder %s15, 1
      %p164 = scmp.ne.s32.totalorder %s159, %s161
      %p165 = scmp.eq.s32.totalorder %s15, 0
      %p166 = por %p164, %p165
      %p167 = scmp.ne.s32.totalorder %s159, %s161
      %p168 = scmp.eq.s32.totalorder %s20, 1
      %p169 = por %p167, %p168
      %p170 = scmp.ne.s32.totalorder %s161, %s162
      %p171 = scmp.eq.s32.totalorder %s20, 0
      %p172 = por %p170, %p171
      %p173 = scmp.ne.s32.totalorder %s161, %s162
      %p174 = scmp.eq.s32.totalorder %s21, 1
      %p175 = por %p173, %p174
      %p177 = scmp.ne.s32.totalorder %s162, %s176
      %p178 = scmp.eq.s32.totalorder %s21, 0
      %p179 = por %p177, %p178
      %s181 = sadd.s32 %s180, 1
      %p184 = scmp.eq.s32.totalorder %s15, 1
      %p185 = scmp.ne.s32.totalorder %s180, %s182
      %p186 = scmp.eq.s32.totalorder %s15, 0
      %p187 = por %p185, %p186
      %p188 = scmp.ne.s32.totalorder %s180, %s182
      %p189 = scmp.eq.s32.totalorder %s20, 1
      %p190 = por %p188, %p189
      %p191 = scmp.ne.s32.totalorder %s182, %s183
      %p192 = scmp.eq.s32.totalorder %s20, 0
      %p193 = por %p191, %p192
      %p194 = scmp.ne.s32.totalorder %s182, %s183
      %p195 = scmp.eq.s32.totalorder %s21, 1
      %p196 = por %p194, %p195
      %p198 = scmp.ne.s32.totalorder %s183, %s197
      %p199 = scmp.eq.s32.totalorder %s21, 0
      %p200 = por %p198, %p199
      %s202 = sadd.s32 %s201, 1
      %p205 = scmp.eq.s32.totalorder %s15, 1
      %p206 = scmp.ne.s32.totalorder %s201, %s203
      %p207 = scmp.eq.s32.totalorder %s15, 0
      %p208 = por %p206, %p207
      %p209 = scmp.ne.s32.totalorder %s201, %s203
      %p210 = scmp.eq.s32.totalorder %s20, 1
      %p211 = por %p209, %p210
      %p212 = scmp.ne.s32.totalorder %s203, %s204
      %p213 = scmp.eq.s32.totalorder %s20, 0
      %p214 = por %p212, %p213
      %p215 = scmp.ne.s32.totalorder %s203, %s204
      %p216 = scmp.eq.s32.totalorder %s21, 1
      %p217 = por %p215, %p216
      %p219 = scmp.ne.s32.totalorder %s204, %s218
      %p220 = scmp.eq.s32.totalorder %s21, 0
      %p221 = por %p219, %p220
      %s222 = ssub.s32 %s22, %s34
      %p223 = scmp.eq.s32.totalorder %s222, 0
      %s225 = sadd.s32 %s224, 1
      %s226 = scalar_select %p223, %s224, %s225
      %p229 = pneg %p223
      %p230 = scmp.eq.s32.totalorder %s15, 1
      %p231 = por %p229, %p230
      %p232 = scmp.ne.s32.totalorder %s224, %s227
      %p233 = scmp.eq.s32.totalorder %s15, 0
      %p234 = por %p232, %p233
      %p235 = scmp.ne.s32.totalorder %s224, %s227
      %p236 = scmp.eq.s32.totalorder %s20, 1
      %p237 = por %p235, %p236
      %p238 = scmp.ne.s32.totalorder %s227, %s228
      %p239 = scmp.eq.s32.totalorder %s20, 0
      %p240 = por %p238, %p239
      %p241 = scmp.ne.s32.totalorder %s227, %s228
      %p242 = scmp.eq.s32.totalorder %s21, 1
      %p243 = por %p241, %p242
      %p245 = scmp.ne.s32.totalorder %s228, %s244
      %p246 = scmp.eq.s32.totalorder %s21, 0
      %p247 = por %p245, %p246
      %p248 = scmp.le.s32.totalorder 1, %s15
      %p249 = scmp.lt.s32.totalorder %s15, 3
      %p250 = pnand %p248, %p249
      %p251 = pneg %p250
      // Predicated region
      $region9: #{tpu_custom_call.1} parent=5 // pred_check
        _
      $region10: #{tpu_custom_call.1} parent=5 // pred_check_branch
        %253 = sbr.rel (%p250) target = $region12
      $region11: #{tpu_custom_call.1} parent=5 // pred_region
        %s254 = ssub.s32 %s15, 1
        // Predicated region
        $region13: #{tpu_custom_call.1} parent=11 // pred_check
          %p255 = pneg %p109
        $region14: #{tpu_custom_call.1} parent=11 // pred_check_branch
          %257 = sbr.rel (%p255) target = $region16
        $region15: #{tpu_custom_call.1} parent=11 // pred_region
          %s258 = smul.u32 2, %s24
          %p259 = scmp.lt.s32.totalorder %s258, 1
          %s260 = scalar_select %p259, %s258, 1
          %s261 = smul.addr %s260, 8
          %s262 = scalar_lea.vmem %s2, %s261
          %s263 = smul.u32 2, %s24
        $region16: #{tpu_custom_call.1} parent=11 // pred_fallthru
          _
        // Predicated region
        $region17: #{tpu_custom_call.1} parent=11 // pred_check
          %p264 = pneg %p130
        $region18: #{tpu_custom_call.1} parent=11 // pred_check_branch
          %266 = sbr.rel (%p264) target = $region20
        $region19: #{tpu_custom_call.1} parent=11 // pred_region
          _
        $region20: #{tpu_custom_call.1} parent=11 // pred_fallthru
          _
        // Predicated region
        $region21: #{tpu_custom_call.1} parent=11 // pred_check
          %p267 = pneg %p151
        $region22: #{tpu_custom_call.1} parent=11 // pred_check_branch
          %269 = sbr.rel (%p267) target = $region24
        $region23: #{tpu_custom_call.1} parent=11 // pred_region
          _
        $region24: #{tpu_custom_call.1} parent=11 // pred_fallthru
          _
        // Predicated region
        $region25: #{tpu_custom_call.1} parent=11 // pred_check
          %p270 = pneg %p172
        $region26: #{tpu_custom_call.1} parent=11 // pred_check_branch
          %272 = sbr.rel (%p270) target = $region28
        $region27: #{tpu_custom_call.1} parent=11 // pred_region
          _
        $region28: #{tpu_custom_call.1} parent=11 // pred_fallthru
          _
        // Predicated region
        $region29: #{tpu_custom_call.1} parent=11 // pred_check
          %p273 = pneg %p193
        $region30: #{tpu_custom_call.1} parent=11 // pred_check_branch
          %275 = sbr.rel (%p273) target = $region32
        $region31: #{tpu_custom_call.1} parent=11 // pred_region
          _
        $region32: #{tpu_custom_call.1} parent=11 // pred_fallthru
          _
        // Predicated region
        $region33: #{tpu_custom_call.1} parent=11 // pred_check
          %p276 = pneg %p214
        $region34: #{tpu_custom_call.1} parent=11 // pred_check_branch
          %278 = sbr.rel (%p276) target = $region36
        $region35: #{tpu_custom_call.1} parent=11 // pred_region
          _
        $region36: #{tpu_custom_call.1} parent=11 // pred_fallthru
          _
      $region12: #{tpu_custom_call.1} parent=5 // pred_fallthru
        _
      %p279 = scmp.lt.s32.totalorder %s15, 2
      // Predicated region
      $region37: #{tpu_custom_call.1} parent=5 // pred_check
        %p280 = pneg %p279
      $region38: #{tpu_custom_call.1} parent=5 // pred_check_branch
        %282 = sbr.rel (%p280) target = $region40
      $region39: #{tpu_custom_call.1} parent=5 // pred_region
        // Predicated region
        $region41: #{tpu_custom_call.1} parent=39 // pred_check
          %p283 = pneg %p49
        $region42: #{tpu_custom_call.1} parent=39 // pred_check_branch
          %285 = sbr.rel (%p283) target = $region44
        $region43: #{tpu_custom_call.1} parent=39 // pred_region
          %s286 = sand.u32 %s39, 1
          %s287 = sand.u32 %s39, 1
          %s288 = smul.addr %s287, 16
          %s289 = scalar_lea.vmem [#allocation5], %s288
          %s290 = smul.u32 2, %s22
          %s291 = smul.addr %s290, 2
          %s292 = sadd.s32 %s23, %s291
          %s293 = smul.addr %s292, 8
          %s294 = scalar_lea.vmem %s0, %s293
          // Predicated region
          $region45: #{tpu_custom_call.1} parent=43 // pred_check
            _
          $region46: #{tpu_custom_call.1} parent=43 // pred_check_branch
            %296 = sbr.rel (0) target = $region48
          $region47: #{tpu_custom_call.1} parent=43 // pred_region
            // Predicated region
            $region49: #{tpu_custom_call.1} parent=47 // pred_check
              _
            $region50: #{tpu_custom_call.1} parent=47 // pred_check_branch
              %298 = sbr.rel (0) target = $region52
            $region51: #{tpu_custom_call.1} parent=47 // pred_region
              // Predicated region
              $region64: #{tpu_custom_call.1} parent=51 // pred_check
                _
              $region65: #{tpu_custom_call.1} parent=51 // pred_check_branch
                %315 = sbr.rel (0) target = $region67
              $region66: #{tpu_custom_call.1} parent=51 // pred_region
                loop: start=0, step=1, limit=1
                $region68: #{tpu_custom_call.1} parent=66 // loop_pre_header
                  _
                $region69: #{tpu_custom_call.1} parent=66 // loop_header
                  %s317 = sphi 0, %s321
                  %p318 = scmp.ge.s32.totalorder %s317, 1
                  %s322 = sphi %s294, %s294
                  %s323 = sphi %s289, %s289
                $region70: #{tpu_custom_call.1} parent=66 // loop_header_branch
                  %320 = sbr.rel (%p318) target = $region74
                $region71: #{tpu_custom_call.1} parent=66 // loop_body
                  %v324 = vld [vmem:[%s322] sm:$0xff]
                  %325 = vst [vmem:[%s323] sm:$0xff] %v324
                  %v326 = vld [vmem:[%s322 + $0x10] sm:$0xff]
                  %327 = vst [vmem:[%s323 + $0x8] sm:$0xff] %v326
                $region72: #{tpu_custom_call.1} parent=66 // loop_footer
                  %s321 = sadd.s32 1, %s317
                $region73: #{tpu_custom_call.1} parent=66 // loop_footer_branch
                  %316 = sbr.rel target = $region69
                $region74: #{tpu_custom_call.1} parent=66 // loop_exit
                  _
              $region67: #{tpu_custom_call.1} parent=51 // pred_fallthru
                _
              // Predicated region
              $region75: #{tpu_custom_call.1} parent=51 // pred_check
                _
              $region76: #{tpu_custom_call.1} parent=51 // pred_check_branch
                %329 = sbr.rel target = $region78
              $region77: #{tpu_custom_call.1} parent=51 // pred_region
                _
              $region78: #{tpu_custom_call.1} parent=51 // pred_fallthru
                _
            $region52: #{tpu_custom_call.1} parent=47 // pred_fallthru
              _
            // Predicated region
            $region53: #{tpu_custom_call.1} parent=47 // pred_check
              _
            $region54: #{tpu_custom_call.1} parent=47 // pred_check_branch
              %300 = sbr.rel target = $region56
            $region55: #{tpu_custom_call.1} parent=47 // pred_region
              loop: start=0, step=1, limit=1
              $region57: #{tpu_custom_call.1} parent=55 // loop_pre_header
                _
              $region58: #{tpu_custom_call.1} parent=55 // loop_header
                %s303 = sphi 0, %s307
                %p304 = scmp.ge.s32.totalorder %s303, 1
                %s308 = sphi %s294, %s294
                %s309 = sphi %s289, %s289
              $region59: #{tpu_custom_call.1} parent=55 // loop_header_branch
                %306 = sbr.rel (%p304) target = $region63
              $region60: #{tpu_custom_call.1} parent=55 // loop_body
                %v310 = vld [vmem:[%s308] sm:$0xff]
                %311 = vst [vmem:[%s309] sm:$0xff] %v310
                %v312 = vld [vmem:[%s308 + $0x10] sm:$0xff]
                %313 = vst [vmem:[%s309 + $0x8] sm:$0xff] %v312
              $region61: #{tpu_custom_call.1} parent=55 // loop_footer
                %s307 = sadd.s32 1, %s303
              $region62: #{tpu_custom_call.1} parent=55 // loop_footer_branch
                %302 = sbr.rel target = $region58
              $region63: #{tpu_custom_call.1} parent=55 // loop_exit
                _
            $region56: #{tpu_custom_call.1} parent=47 // pred_fallthru
              _
          $region48: #{tpu_custom_call.1} parent=43 // pred_fallthru
            _
          %330 = vnop
        $region44: #{tpu_custom_call.1} parent=39 // pred_fallthru
          _
        // Predicated region
        $region79: #{tpu_custom_call.1} parent=39 // pred_check
          %p331 = pneg %p77
        $region80: #{tpu_custom_call.1} parent=39 // pred_check_branch
          %333 = sbr.rel (%p331) target = $region82
        $region81: #{tpu_custom_call.1} parent=39 // pred_region
          %s334 = sand.u32 %s67, 1
          %s335 = sand.u32 %s67, 1
          %s336 = smul.addr %s335, 16
          %s337 = scalar_lea.vmem [#allocation6], %s336
          %s338 = smul.u32 2, %s22
          %s339 = smul.addr %s338, 2
          %s340 = sadd.s32 %s23, %s339
          %s341 = smul.addr %s340, 8
          %s342 = scalar_lea.vmem %s1, %s341
          // Predicated region
          $region83: #{tpu_custom_call.1} parent=81 // pred_check
            _
          $region84: #{tpu_custom_call.1} parent=81 // pred_check_branch
            %344 = sbr.rel (0) target = $region86
          $region85: #{tpu_custom_call.1} parent=81 // pred_region
            // Predicated region
            $region87: #{tpu_custom_call.1} parent=85 // pred_check
              _
            $region88: #{tpu_custom_call.1} parent=85 // pred_check_branch
              %346 = sbr.rel (0) target = $region90
            $region89: #{tpu_custom_call.1} parent=85 // pred_region
              // Predicated region
              $region102: #{tpu_custom_call.1} parent=89 // pred_check
                _
              $region103: #{tpu_custom_call.1} parent=89 // pred_check_branch
                %363 = sbr.rel (0) target = $region105
              $region104: #{tpu_custom_call.1} parent=89 // pred_region
                loop: start=0, step=1, limit=1
                $region106: #{tpu_custom_call.1} parent=104 // loop_pre_header
                  _
                $region107: #{tpu_custom_call.1} parent=104 // loop_header
                  %s365 = sphi 0, %s369
                  %p366 = scmp.ge.s32.totalorder %s365, 1
                  %s370 = sphi %s342, %s342
                  %s371 = sphi %s337, %s337
                $region108: #{tpu_custom_call.1} parent=104 // loop_header_branch
                  %368 = sbr.rel (%p366) target = $region112
                $region109: #{tpu_custom_call.1} parent=104 // loop_body
                  %v372 = vld [vmem:[%s370] sm:$0xff]
                  %373 = vst [vmem:[%s371] sm:$0xff] %v372
                  %v374 = vld [vmem:[%s370 + $0x10] sm:$0xff]
                  %375 = vst [vmem:[%s371 + $0x8] sm:$0xff] %v374
                $region110: #{tpu_custom_call.1} parent=104 // loop_footer
                  %s369 = sadd.s32 1, %s365
                $region111: #{tpu_custom_call.1} parent=104 // loop_footer_branch
                  %364 = sbr.rel target = $region107
                $region112: #{tpu_custom_call.1} parent=104 // loop_exit
                  _
              $region105: #{tpu_custom_call.1} parent=89 // pred_fallthru
                _
              // Predicated region
              $region113: #{tpu_custom_call.1} parent=89 // pred_check
                _
              $region114: #{tpu_custom_call.1} parent=89 // pred_check_branch
                %377 = sbr.rel target = $region116
              $region115: #{tpu_custom_call.1} parent=89 // pred_region
                _
              $region116: #{tpu_custom_call.1} parent=89 // pred_fallthru
                _
            $region90: #{tpu_custom_call.1} parent=85 // pred_fallthru
              _
            // Predicated region
            $region91: #{tpu_custom_call.1} parent=85 // pred_check
              _
            $region92: #{tpu_custom_call.1} parent=85 // pred_check_branch
              %348 = sbr.rel target = $region94
            $region93: #{tpu_custom_call.1} parent=85 // pred_region
              loop: start=0, step=1, limit=1
              $region95: #{tpu_custom_call.1} parent=93 // loop_pre_header
                _
              $region96: #{tpu_custom_call.1} parent=93 // loop_header
                %s351 = sphi 0, %s355
                %p352 = scmp.ge.s32.totalorder %s351, 1
                %s356 = sphi %s342, %s342
                %s357 = sphi %s337, %s337
              $region97: #{tpu_custom_call.1} parent=93 // loop_header_branch
                %354 = sbr.rel (%p352) target = $region101
              $region98: #{tpu_custom_call.1} parent=93 // loop_body
                %v358 = vld [vmem:[%s356] sm:$0xff]
                %359 = vst [vmem:[%s357] sm:$0xff] %v358
                %v360 = vld [vmem:[%s356 + $0x10] sm:$0xff]
                %361 = vst [vmem:[%s357 + $0x8] sm:$0xff] %v360
              $region99: #{tpu_custom_call.1} parent=93 // loop_footer
                %s355 = sadd.s32 1, %s351
              $region100: #{tpu_custom_call.1} parent=93 // loop_footer_branch
                %350 = sbr.rel target = $region96
              $region101: #{tpu_custom_call.1} parent=93 // loop_exit
                _
            $region94: #{tpu_custom_call.1} parent=85 // pred_fallthru
              _
          $region86: #{tpu_custom_call.1} parent=81 // pred_fallthru
            _
          %378 = vnop
        $region82: #{tpu_custom_call.1} parent=39 // pred_fallthru
          _
      $region40: #{tpu_custom_call.1} parent=5 // pred_fallthru
        _
      %p379 = scmp.le.s32.totalorder 1, %s15
      %p380 = scmp.lt.s32.totalorder %s15, 3
      %p381 = pnand %p379, %p380
      %p382 = pneg %p381
      // Predicated region
      $region117: #{tpu_custom_call.1} parent=5 // pred_check
        _
      $region118: #{tpu_custom_call.1} parent=5 // pred_check_branch
        %384 = sbr.rel (%p381) target = $region120
      $region119: #{tpu_custom_call.1} parent=5 // pred_region
        %s385 = ssub.s32 %s15, 1
        %s386 = sand.u32 %s42, 1
        %s387 = sand.u32 %s42, 1
        %s388 = smul.addr %s387, 16
        %s389 = scalar_lea.vmem [#allocation5], %s388
        // Predicated region
        $region121: #{tpu_custom_call.1} parent=119 // pred_check
          %p390 = pneg %p55
        $region122: #{tpu_custom_call.1} parent=119 // pred_check_branch
          %392 = sbr.rel (%p390) target = $region124
        $region123: #{tpu_custom_call.1} parent=119 // pred_region
          _
        $region124: #{tpu_custom_call.1} parent=119 // pred_fallthru
          _
        %s393 = sand.u32 %s70, 1
        %s394 = sand.u32 %s70, 1
        %s395 = smul.addr %s394, 16
        %s396 = scalar_lea.vmem [#allocation6], %s395
        // Predicated region
        $region125: #{tpu_custom_call.1} parent=119 // pred_check
          %p397 = pneg %p83
        $region126: #{tpu_custom_call.1} parent=119 // pred_check_branch
          %399 = sbr.rel (%p397) target = $region128
        $region127: #{tpu_custom_call.1} parent=119 // pred_region
          _
        $region128: #{tpu_custom_call.1} parent=119 // pred_fallthru
          _
        %s400 = sand.u32 %s42, 1
        %s401 = sand.u32 %s42, 1
        %s402 = smul.addr %s401, 16
        %s403 = scalar_lea.vmem [#allocation5], %s402
        %p404 = pneg %p55
        %p405 = pneg %p52
        %s406 = sand.u32 %s70, 1
        %s407 = sand.u32 %s70, 1
        %s408 = smul.addr %s407, 16
        %s409 = scalar_lea.vmem [#allocation6], %s408
        %p410 = pneg %p83
        %p411 = pneg %p80
        %s412 = smul.u32 2, %s24
        %p413 = scmp.lt.s32.totalorder %s412, 1
        %s414 = scalar_select %p413, %s412, 1
        %s415 = smul.addr %s414, 8
        %s416 = scalar_lea.vmem %s2, %s415
        %p417 = pneg %p109
        %p418 = pneg %p106
        %p419 = pneg %p130
        %p420 = pneg %p127
        %p421 = pneg %p151
        %p422 = pneg %p148
        %p423 = pneg %p172
        %p424 = pneg %p169
        %p425 = pneg %p193
        %p426 = pneg %p190
        %p427 = pneg %p214
        %p428 = pneg %p211
        %p429 = pneg %p240
        %p430 = pneg %p237
        %s431 = smul.u32 2, %s24
        %s432 = smul.u32 2, %s24
        %s433 = smul.u32 2, %s24
        %p434 = scmp.lt.s32.totalorder %s433, 1
        %s435 = scalar_select %p434, %s433, 1
        %s436 = smul.addr %s435, 8
        %s437 = scalar_lea.vmem %s2, %s436
        %s438 = smul.u32 2, %s24
        %s439 = smul.u32 2, %s24
        %p441 = scmp.eq.s32.totalorder %s25, 0
        // Predicated region
        $region129: #{tpu_custom_call.1} parent=119 // pred_check
          %p442 = pneg %p441
        $region130: #{tpu_custom_call.1} parent=119 // pred_check_branch
          %444 = sbr.rel (%p442) target = $region132
        $region131: #{tpu_custom_call.1} parent=119 // pred_region
          %v445 = vld [vmem:[%s437] sm:$0xff]
          %v446 = vld [vmem:[%s437 + $0x8] sm:$0xff]
          %v447 = vpack.c.bf16 %v446, %v445
          %v448 = vld [vmem:[%s3] sm:$0xff]
          %v449 = vld [vmem:[%s3 + $0x8] sm:$0xff]
          %v450 = vld [vmem:[%s3 + $0x10] sm:$0xff]
          %v451 = vld [vmem:[%s3 + $0x18] sm:$0xff]
          %v452 = vld [vmem:[%s3 + $0x20] sm:$0xff]
          %v453 = vld [vmem:[%s3 + $0x28] sm:$0xff]
          %v454 = vld [vmem:[%s3 + $0x30] sm:$0xff]
          %v455 = vld [vmem:[%s3 + $0x38] sm:$0xff]
          %v456 = vld [vmem:[%s3 + $0x40] sm:$0xff]
          %v457 = vld [vmem:[%s3 + $0x48] sm:$0xff]
          %v458 = vld [vmem:[%s3 + $0x50] sm:$0xff]
          %v459 = vld [vmem:[%s3 + $0x58] sm:$0xff]
          %v460 = vld [vmem:[%s3 + $0x60] sm:$0xff]
          %v461 = vld [vmem:[%s3 + $0x68] sm:$0xff]
          %v462 = vld [vmem:[%s3 + $0x70] sm:$0xff]
          %v463 = vld [vmem:[%s3 + $0x78] sm:$0xff]
          %v464 = vld [vmem:[%s3 + $0x80] sm:$0xff]
          %v465 = vld [vmem:[%s3 + $0x88] sm:$0xff]
          %v466 = vld [vmem:[%s3 + $0x90] sm:$0xff]
          %v467 = vld [vmem:[%s3 + $0x98] sm:$0xff]
          %v468 = vpack.c.bf16 %v453, %v448
          %v469 = vpack.c.bf16 %v454, %v449
          %v470 = vpack.c.bf16 %v455, %v450
          %v471 = vpack.c.bf16 %v456, %v451
          %v472 = vpack.c.bf16 %v457, %v452
          %v473 = vpack.c.bf16 %v463, %v458
          %v474 = vpack.c.bf16 %v464, %v459
          %v475 = vpack.c.bf16 %v465, %v460
          %v476 = vpack.c.bf16 %v466, %v461
          %v477 = vpack.c.bf16 %v467, %v462
          %vm478 = vcmask 261120
          %v480 = vsel %vm478, %v447, 0
          %482 = vmatprep.subr.bf16.mxu0 %v469
          %483 = vmatpush1.bf16.msra.mxu0 %v468
          %484 = vmatprep.subr.bf16.mxu0 %v474
          %485 = vmatpush1.bf16.msra.mxu0 %v473
          %486 = vmatprep.subr.bf16.mxu0 0
          %487 = vmatpush1.bf16.msra.mxu0 0
          %488 = vmatprep.subr.bf16.mxu0 0
          %489 = vmatpush1.bf16.msra.mxu0 0
          %490 = vmatprep.subr.bf16.mxu0 0
          %491 = vmatpush1.bf16.msra.mxu0 0
          %492 = vmatprep.subr.bf16.mxu0 0
          %493 = vmatpush1.bf16.msra.mxu0 0
          %494 = vmatprep.subr.bf16.mxu0 0
          %495 = vmatpush1.bf16.msra.mxu0 0
          %496 = vmatprep.subr.bf16.mxu0 0
          %497 = vmatpush1.bf16.msra.mxu0 0
          %498 = vmatprep.subr.bf16.mxu0 0
          %499 = vmatpush1.bf16.msra.mxu0 0
          %500 = vmatprep.subr.bf16.mxu0 0
          %501 = vmatpush1.bf16.msra.mxu0 0
          %502 = vmatprep.subr.bf16.mxu0 0
          %503 = vmatpush1.bf16.msra.mxu0 0
          %504 = vmatprep.subr.bf16.mxu0 0
          %505 = vmatpush1.bf16.msra.mxu0 0
          %506 = vmatprep.subr.bf16.mxu0 0
          %507 = vmatpush1.bf16.msra.mxu0 0
          %508 = vmatprep.subr.bf16.mxu0 0
          %509 = vmatpush1.bf16.msra.mxu0 0
          %510 = vmatprep.subr.bf16.mxu0 0
          %511 = vmatpush1.bf16.msra.mxu0 0
          %512 = vmatprep.subr.bf16.mxu0 0
          %513 = vmatpush1.bf16.msra.mxu0 0
          %514 = vmatprep.mubr.bf16.mxu0 0
          %515 = vmatmul.mubr.bf16.gmra.mrb[0].mxu0 %v480
          %v516 = vpop.f32.mrb[0].mxu0
          %v517 = vadd.f32 0.0, %v516
          %v518 = vpop.f32.mrb[0].mxu0
          %v519 = vadd.f32 0.0, %v518
          %v520 = vpop.f32.mrb[0].mxu0
          %v521 = vadd.f32 0.0, %v520
          %v522 = vpop.f32.mrb[0].mxu0
          %v523 = vadd.f32 0.0, %v522
          %524 = vdwg.mxu0
          %525 = vmatprep.subr.bf16.mxu0 %v471
          %526 = vmatpush1.bf16.msra.mxu0 %v470
          %527 = vmatprep.subr.bf16.mxu0 %v476
          %528 = vmatpush1.bf16.msra.mxu0 %v475
          %529 = vmatprep.subr.bf16.mxu0 0
          %530 = vmatpush1.bf16.msra.mxu0 0
          %531 = vmatprep.subr.bf16.mxu0 0
          %532 = vmatpush1.bf16.msra.mxu0 0
          %533 = vmatprep.subr.bf16.mxu0 0
          %534 = vmatpush1.bf16.msra.mxu0 0
          %535 = vmatprep.subr.bf16.mxu0 0
          %536 = vmatpush1.bf16.msra.mxu0 0
          %537 = vmatprep.subr.bf16.mxu0 0
          %538 = vmatpush1.bf16.msra.mxu0 0
          %539 = vmatprep.subr.bf16.mxu0 0
          %540 = vmatpush1.bf16.msra.mxu0 0
          %541 = vmatprep.subr.bf16.mxu0 0
          %542 = vmatpush1.bf16.msra.mxu0 0
          %543 = vmatprep.subr.bf16.mxu0 0
          %544 = vmatpush1.bf16.msra.mxu0 0
          %545 = vmatprep.subr.bf16.mxu0 0
          %546 = vmatpush1.bf16.msra.mxu0 0
          %547 = vmatprep.subr.bf16.mxu0 0
          %548 = vmatpush1.bf16.msra.mxu0 0
          %549 = vmatprep.subr.bf16.mxu0 0
          %550 = vmatpush1.bf16.msra.mxu0 0
          %551 = vmatprep.subr.bf16.mxu0 0
          %552 = vmatpush1.bf16.msra.mxu0 0
          %553 = vmatprep.subr.bf16.mxu0 0
          %554 = vmatpush1.bf16.msra.mxu0 0
          %555 = vmatprep.subr.bf16.mxu0 0
          %556 = vmatpush1.bf16.msra.mxu0 0
          %557 = vmatprep.mubr.bf16.mxu0 0
          %558 = vmatmul.mubr.bf16.gmra.mrb[0].mxu0 %v480
          %v559 = vpop.f32.mrb[0].mxu0
          %v560 = vadd.f32 0.0, %v559
          %v561 = vpop.f32.mrb[0].mxu0
          %v562 = vadd.f32 0.0, %v561
          %v563 = vpop.f32.mrb[0].mxu0
          %v564 = vadd.f32 0.0, %v563
          %v565 = vpop.f32.mrb[0].mxu0
          %v566 = vadd.f32 0.0, %v565
          %567 = vdwg.mxu0
          %568 = vmatprep.subr.bf16.mxu0 0
          %569 = vmatpush1.bf16.msra.mxu0 %v472
          %570 = vmatprep.subr.bf16.mxu0 0
          %571 = vmatpush1.bf16.msra.mxu0 %v477
          %572 = vmatprep.subr.bf16.mxu0 0
          %573 = vmatpush1.bf16.msra.mxu0 0
          %574 = vmatprep.subr.bf16.mxu0 0
          %575 = vmatpush1.bf16.msra.mxu0 0
          %576 = vmatprep.subr.bf16.mxu0 0
          %577 = vmatpush1.bf16.msra.mxu0 0
          %578 = vmatprep.subr.bf16.mxu0 0
          %579 = vmatpush1.bf16.msra.mxu0 0
          %580 = vmatprep.subr.bf16.mxu0 0
          %581 = vmatpush1.bf16.msra.mxu0 0
          %582 = vmatprep.subr.bf16.mxu0 0
          %583 = vmatpush1.bf16.msra.mxu0 0
          %584 = vmatprep.subr.bf16.mxu0 0
          %585 = vmatpush1.bf16.msra.mxu0 0
          %586 = vmatprep.subr.bf16.mxu0 0
          %587 = vmatpush1.bf16.msra.mxu0 0
          %588 = vmatprep.subr.bf16.mxu0 0
          %589 = vmatpush1.bf16.msra.mxu0 0
          %590 = vmatprep.subr.bf16.mxu0 0
          %591 = vmatpush1.bf16.msra.mxu0 0
          %592 = vmatprep.subr.bf16.mxu0 0
          %593 = vmatpush1.bf16.msra.mxu0 0
          %594 = vmatprep.subr.bf16.mxu0 0
          %595 = vmatpush1.bf16.msra.mxu0 0
          %596 = vmatprep.subr.bf16.mxu0 0
          %597 = vmatpush1.bf16.msra.mxu0 0
          %598 = vmatprep.subr.bf16.mxu0 0
          %599 = vmatpush1.bf16.msra.mxu0 0
          %600 = vmatprep.mubr.bf16.mxu0 0
          %601 = vmatmul.mubr.bf16.gmra.mrb[0].mxu0 %v480
          %v602 = vpop.f32.mrb[0].mxu0
          %v603 = vadd.f32 0.0, %v602
          %v604 = vpop.f32.mrb[0].mxu0
          %v605 = vpop.f32.mrb[0].mxu0
          %v606 = vadd.f32 0.0, %v605
          %v607 = vpop.f32.mrb[0].mxu0
          %608 = vdwg.mxu0
          %609 = vst [vmem:[#allocation2] sm:$0xff] %v517
          %610 = vst [vmem:[#allocation2 + $0x8] sm:$0xff] %v519
          %611 = vst [vmem:[#allocation2 + $0x10] sm:$0xff] %v560
          %612 = vst [vmem:[#allocation2 + $0x18] sm:$0xff] %v562
          %613 = vst [vmem:[#allocation2 + $0x20] sm:$0xff] %v603
          %614 = vst [vmem:[#allocation2 + $0x28] sm:$0xff] %v521
          %615 = vst [vmem:[#allocation2 + $0x30] sm:$0xff] %v523
          %616 = vst [vmem:[#allocation2 + $0x38] sm:$0xff] %v564
          %617 = vst [vmem:[#allocation2 + $0x40] sm:$0xff] %v566
          %618 = vst [vmem:[#allocation2 + $0x48] sm:$0xff] %v606
          %619 = vst [vmem:[#allocation3] sm:$0xff] 0.0
          %620 = vst [vmem:[#allocation3 + $0x8] sm:$0xff] 0.0
          %621 = vst [vmem:[#allocation3 + $0x10] sm:$0xff] 0.0
          %622 = vst [vmem:[#allocation3 + $0x18] sm:$0xff] 0.0
          %623 = vst [vmem:[#allocation3 + $0x20] sm:$0xff] 0.0
          %624 = vst [vmem:[#allocation3 + $0x28] sm:$0xff] 0.0
          %625 = vst [vmem:[#allocation3 + $0x30] sm:$0xff] 0.0
          %626 = vst [vmem:[#allocation3 + $0x38] sm:$0xff] 0.0
          %627 = vst [vmem:[#allocation3 + $0x40] sm:$0xff] 0.0
          %628 = vst [vmem:[#allocation3 + $0x48] sm:$0xff] 0.0
          %vm629 = vcmask 39936
          %630 = vst.msk [vmem:[#allocation4] sm:$0xff] %vm629, 0.0
          %631 = vst.msk [vmem:[#allocation4 + $0x8] sm:$0xff] %vm629, 0.0
        $region132: #{tpu_custom_call.1} parent=119 // pred_fallthru
          _
        %v632 = vld [vmem:[%s396] sm:$0xff]
        %v633 = vld [vmem:[%s396 + $0x8] sm:$0xff]
        %v634 = vld [vmem:[%s389] sm:$0xff]
        %v635 = vld [vmem:[%s389 + $0x8] sm:$0xff]
        %v636 = vpack.c.bf16 %v632, %v632
        %v637 = vpack.c.bf16 %v633, %v633
        %v638 = vld [vmem:[#allocation2] sm:$0xff]
        %v639 = vld [vmem:[#allocation2 + $0x8] sm:$0xff]
        %v640 = vld [vmem:[#allocation2 + $0x10] sm:$0xff]
        %v641 = vld [vmem:[#allocation2 + $0x18] sm:$0xff]
        %v642 = vld [vmem:[#allocation2 + $0x20] sm:$0xff]
        %v643 = vld [vmem:[#allocation2 + $0x28] sm:$0xff]
        %v644 = vld [vmem:[#allocation2 + $0x30] sm:$0xff]
        %v645 = vld [vmem:[#allocation2 + $0x38] sm:$0xff]
        %v646 = vld [vmem:[#allocation2 + $0x40] sm:$0xff]
        %v647 = vld [vmem:[#allocation2 + $0x48] sm:$0xff]
        %v648 = vpack.c.bf16 %v638, %v638
        %v649 = vpack.c.bf16 %v639, %v639
        %v650 = vpack.c.bf16 %v640, %v640
        %v651 = vpack.c.bf16 %v641, %v641
        %v652 = vpack.c.bf16 %v642, %v642
        %v653 = vpack.c.bf16 %v643, %v643
        %v654 = vpack.c.bf16 %v644, %v644
        %v655 = vpack.c.bf16 %v645, %v645
        %v656 = vpack.c.bf16 %v646, %v646
        %v657 = vpack.c.bf16 %v647, %v647
        %v658 = vld [vmem:[%s4] sm:$0x1f]
        %v660 = vlaneseq
        %v661 = vshrl.u32 %v660, 7
        %v662 = vsub.s32 0, %v661
        %v663 = vrot.slane %v658, %v662
        %v664 = vlaneseq
        %v665 = vshrl.u32 %v664, 7
        %v666 = vsub.s32 1, %v665
        %v667 = vrot.slane %v658, %v666
        %v668 = vlaneseq
        %v669 = vshrl.u32 %v668, 7
        %v670 = vsub.s32 2, %v669
        %v671 = vrot.slane %v658, %v670
        %v672 = vlaneseq
        %v673 = vshrl.u32 %v672, 7
        %v674 = vsub.s32 3, %v673
        %v675 = vrot.slane %v658, %v674
        %v676 = vlaneseq
        %v677 = vshrl.u32 %v676, 7
        %v678 = vsub.s32 4, %v677
        %v679 = vrot.slane %v658, %v678
        %vm685 = vcmask 64512
        %v687 = vsel %vm685, %v636, 0
        %vm689 = vcmask 1043456
        %v691 = vsel %vm689, %v648, 0
        %v694 = vsel %vm689, %v649, 0
        %v697 = vsel %vm689, %v650, 0
        %v700 = vsel %vm689, %v651, 0
        %v703 = vsel %vm689, %v652, 0
        %705 = vmatprep.subr.bf16.mxu0 %v694
        %706 = vmatpush1.bf16.msra.mxu0 %v691
        %707 = vmatprep.subr.bf16.mxu0 0
        %708 = vmatpush1.bf16.msra.mxu0 0
        %709 = vmatprep.subr.bf16.mxu0 0
        %710 = vmatpush1.bf16.msra.mxu0 0
        %711 = vmatprep.subr.bf16.mxu0 0
        %712 = vmatpush1.bf16.msra.mxu0 0
        %713 = vmatprep.subr.bf16.mxu0 0
        %714 = vmatpush1.bf16.msra.mxu0 0
        %715 = vmatprep.subr.bf16.mxu0 0
        %716 = vmatpush1.bf16.msra.mxu0 0
        %717 = vmatprep.subr.bf16.mxu0 0
        %718 = vmatpush1.bf16.msra.mxu0 0
        %719 = vmatprep.subr.bf16.mxu0 0
        %720 = vmatpush1.bf16.msra.mxu0 0
        %721 = vmatprep.subr.bf16.mxu0 0
        %722 = vmatpush1.bf16.msra.mxu0 0
        %723 = vmatprep.subr.bf16.mxu0 0
        %724 = vmatpush1.bf16.msra.mxu0 0
        %725 = vmatprep.subr.bf16.mxu0 0
        %726 = vmatpush1.bf16.msra.mxu0 0
        %727 = vmatprep.subr.bf16.mxu0 0
        %728 = vmatpush1.bf16.msra.mxu0 0
        %729 = vmatprep.subr.bf16.mxu0 0
        %730 = vmatpush1.bf16.msra.mxu0 0
        %731 = vmatprep.subr.bf16.mxu0 0
        %732 = vmatpush1.bf16.msra.mxu0 0
        %733 = vmatprep.subr.bf16.mxu0 0
        %734 = vmatpush1.bf16.msra.mxu0 0
        %735 = vmatprep.subr.bf16.mxu0 0
        %736 = vmatpush1.bf16.msra.mxu0 0
        %737 = vmatprep.mubr.bf16.mxu0 0
        %738 = vmatmul.mubr.bf16.gmra.mrb[0].mxu0 %v687
        %v739 = vpop.f32.mrb[0].mxu0
        %v740 = vadd.f32 %v663, %v739
        %v741 = vpop.f32.mrb[0].mxu0
        %v742 = vadd.f32 %v667, %v741
        %v743 = vpop.f32.mrb[0].mxu0
        %v744 = vpop.f32.mrb[0].mxu0
        %745 = vdwg.mxu0
        %746 = vmatprep.subr.bf16.mxu0 %v700
        %747 = vmatpush1.bf16.msra.mxu0 %v697
        %748 = vmatprep.subr.bf16.mxu0 0
        %749 = vmatpush1.bf16.msra.mxu0 0
        %750 = vmatprep.subr.bf16.mxu0 0
        %751 = vmatpush1.bf16.msra.mxu0 0
        %752 = vmatprep.subr.bf16.mxu0 0
        %753 = vmatpush1.bf16.msra.mxu0 0
        %754 = vmatprep.subr.bf16.mxu0 0
        %755 = vmatpush1.bf16.msra.mxu0 0
        %756 = vmatprep.subr.bf16.mxu0 0
        %757 = vmatpush1.bf16.msra.mxu0 0
        %758 = vmatprep.subr.bf16.mxu0 0
        %759 = vmatpush1.bf16.msra.mxu0 0
        %760 = vmatprep.subr.bf16.mxu0 0
        %761 = vmatpush1.bf16.msra.mxu0 0
        %762 = vmatprep.subr.bf16.mxu0 0
        %763 = vmatpush1.bf16.msra.mxu0 0
        %764 = vmatprep.subr.bf16.mxu0 0
        %765 = vmatpush1.bf16.msra.mxu0 0
        %766 = vmatprep.subr.bf16.mxu0 0
        %767 = vmatpush1.bf16.msra.mxu0 0
        %768 = vmatprep.subr.bf16.mxu0 0
        %769 = vmatpush1.bf16.msra.mxu0 0
        %770 = vmatprep.subr.bf16.mxu0 0
        %771 = vmatpush1.bf16.msra.mxu0 0
        %772 = vmatprep.subr.bf16.mxu0 0
        %773 = vmatpush1.bf16.msra.mxu0 0
        %774 = vmatprep.subr.bf16.mxu0 0
        %775 = vmatpush1.bf16.msra.mxu0 0
        %776 = vmatprep.subr.bf16.mxu0 0
        %777 = vmatpush1.bf16.msra.mxu0 0
        %778 = vmatprep.mubr.bf16.mxu0 0
        %779 = vmatmul.mubr.bf16.gmra.mrb[0].mxu0 %v687
        %v780 = vpop.f32.mrb[0].mxu0
        %v781 = vadd.f32 %v671, %v780
        %v782 = vpop.f32.mrb[0].mxu0
        %v783 = vadd.f32 %v675, %v782
        %v784 = vpop.f32.mrb[0].mxu0
        %v785 = vpop.f32.mrb[0].mxu0
        %786 = vdwg.mxu0
        %787 = vmatprep.subr.bf16.mxu0 0
        %788 = vmatpush1.bf16.msra.mxu0 %v703
        %789 = vmatprep.subr.bf16.mxu0 0
        %790 = vmatpush1.bf16.msra.mxu0 0
        %791 = vmatprep.subr.bf16.mxu0 0
        %792 = vmatpush1.bf16.msra.mxu0 0
        %793 = vmatprep.subr.bf16.mxu0 0
        %794 = vmatpush1.bf16.msra.mxu0 0
        %795 = vmatprep.subr.bf16.mxu0 0
        %796 = vmatpush1.bf16.msra.mxu0 0
        %797 = vmatprep.subr.bf16.mxu0 0
        %798 = vmatpush1.bf16.msra.mxu0 0
        %799 = vmatprep.subr.bf16.mxu0 0
        %800 = vmatpush1.bf16.msra.mxu0 0
        %801 = vmatprep.subr.bf16.mxu0 0
        %802 = vmatpush1.bf16.msra.mxu0 0
        %803 = vmatprep.subr.bf16.mxu0 0
        %804 = vmatpush1.bf16.msra.mxu0 0
        %805 = vmatprep.subr.bf16.mxu0 0
        %806 = vmatpush1.bf16.msra.mxu0 0
        %807 = vmatprep.subr.bf16.mxu0 0
        %808 = vmatpush1.bf16.msra.mxu0 0
        %809 = vmatprep.subr.bf16.mxu0 0
        %810 = vmatpush1.bf16.msra.mxu0 0
        %811 = vmatprep.subr.bf16.mxu0 0
        %812 = vmatpush1.bf16.msra.mxu0 0
        %813 = vmatprep.subr.bf16.mxu0 0
        %814 = vmatpush1.bf16.msra.mxu0 0
        %815 = vmatprep.subr.bf16.mxu0 0
        %816 = vmatpush1.bf16.msra.mxu0 0
        %817 = vmatprep.subr.bf16.mxu0 0
        %818 = vmatpush1.bf16.msra.mxu0 0
        %819 = vmatprep.mubr.bf16.mxu0 0
        %820 = vmatmul.mubr.bf16.gmra.mrb[0].mxu0 %v687
        %v821 = vpop.f32.mrb[0].mxu0
        %v822 = vadd.f32 %v679, %v821
        %v823 = vpop.f32.mrb[0].mxu0
        %v824 = vpop.f32.mrb[0].mxu0
        %v825 = vpop.f32.mrb[0].mxu0
        %826 = vdwg.mxu0
        %v828 = vsel %vm685, %v637, 0
        %v831 = vsel %vm689, %v653, 0
        %v834 = vsel %vm689, %v654, 0
        %v837 = vsel %vm689, %v655, 0
        %v840 = vsel %vm689, %v656, 0
        %v843 = vsel %vm689, %v657, 0
        %845 = vmatprep.subr.bf16.mxu0 %v834
        %846 = vmatpush1.bf16.msra.mxu0 %v831
        %847 = vmatprep.subr.bf16.mxu0 0
        %848 = vmatpush1.bf16.msra.mxu0 0
        %849 = vmatprep.subr.bf16.mxu0 0
        %850 = vmatpush1.bf16.msra.mxu0 0
        %851 = vmatprep.subr.bf16.mxu0 0
        %852 = vmatpush1.bf16.msra.mxu0 0
        %853 = vmatprep.subr.bf16.mxu0 0
        %854 = vmatpush1.bf16.msra.mxu0 0
        %855 = vmatprep.subr.bf16.mxu0 0
        %856 = vmatpush1.bf16.msra.mxu0 0
        %857 = vmatprep.subr.bf16.mxu0 0
        %858 = vmatpush1.bf16.msra.mxu0 0
        %859 = vmatprep.subr.bf16.mxu0 0
        %860 = vmatpush1.bf16.msra.mxu0 0
        %861 = vmatprep.subr.bf16.mxu0 0
        %862 = vmatpush1.bf16.msra.mxu0 0
        %863 = vmatprep.subr.bf16.mxu0 0
        %864 = vmatpush1.bf16.msra.mxu0 0
        %865 = vmatprep.subr.bf16.mxu0 0
        %866 = vmatpush1.bf16.msra.mxu0 0
        %867 = vmatprep.subr.bf16.mxu0 0
        %868 = vmatpush1.bf16.msra.mxu0 0
        %869 = vmatprep.subr.bf16.mxu0 0
        %870 = vmatpush1.bf16.msra.mxu0 0
        %871 = vmatprep.subr.bf16.mxu0 0
        %872 = vmatpush1.bf16.msra.mxu0 0
        %873 = vmatprep.subr.bf16.mxu0 0
        %874 = vmatpush1.bf16.msra.mxu0 0
        %875 = vmatprep.subr.bf16.mxu0 0
        %876 = vmatpush1.bf16.msra.mxu0 0
        %877 = vmatprep.mubr.bf16.mxu0 0
        %878 = vmatmul.mubr.bf16.gmra.mrb[0].mxu0 %v828
        %v879 = vpop.f32.mrb[0].mxu0
        %v880 = vadd.f32 %v663, %v879
        %v881 = vpop.f32.mrb[0].mxu0
        %v882 = vadd.f32 %v667, %v881
        %v883 = vpop.f32.mrb[0].mxu0
        %v884 = vpop.f32.mrb[0].mxu0
        %885 = vdwg.mxu0
        %886 = vmatprep.subr.bf16.mxu0 %v840
        %887 = vmatpush1.bf16.msra.mxu0 %v837
        %888 = vmatprep.subr.bf16.mxu0 0
        %889 = vmatpush1.bf16.msra.mxu0 0
        %890 = vmatprep.subr.bf16.mxu0 0
        %891 = vmatpush1.bf16.msra.mxu0 0
        %892 = vmatprep.subr.bf16.mxu0 0
        %893 = vmatpush1.bf16.msra.mxu0 0
        %894 = vmatprep.subr.bf16.mxu0 0
        %895 = vmatpush1.bf16.msra.mxu0 0
        %896 = vmatprep.subr.bf16.mxu0 0
        %897 = vmatpush1.bf16.msra.mxu0 0
        %898 = vmatprep.subr.bf16.mxu0 0
        %899 = vmatpush1.bf16.msra.mxu0 0
        %900 = vmatprep.subr.bf16.mxu0 0
        %901 = vmatpush1.bf16.msra.mxu0 0
        %902 = vmatprep.subr.bf16.mxu0 0
        %903 = vmatpush1.bf16.msra.mxu0 0
        %904 = vmatprep.subr.bf16.mxu0 0
        %905 = vmatpush1.bf16.msra.mxu0 0
        %906 = vmatprep.subr.bf16.mxu0 0
        %907 = vmatpush1.bf16.msra.mxu0 0
        %908 = vmatprep.subr.bf16.mxu0 0
        %909 = vmatpush1.bf16.msra.mxu0 0
        %910 = vmatprep.subr.bf16.mxu0 0
        %911 = vmatpush1.bf16.msra.mxu0 0
        %912 = vmatprep.subr.bf16.mxu0 0
        %913 = vmatpush1.bf16.msra.mxu0 0
        %914 = vmatprep.subr.bf16.mxu0 0
        %915 = vmatpush1.bf16.msra.mxu0 0
        %916 = vmatprep.subr.bf16.mxu0 0
        %917 = vmatpush1.bf16.msra.mxu0 0
        %918 = vmatprep.mubr.bf16.mxu0 0
        %919 = vmatmul.mubr.bf16.gmra.mrb[0].mxu0 %v828
        %v920 = vpop.f32.mrb[0].mxu0
        %v921 = vadd.f32 %v671, %v920
        %v922 = vpop.f32.mrb[0].mxu0
        %v923 = vadd.f32 %v675, %v922
        %v924 = vpop.f32.mrb[0].mxu0
        %v925 = vpop.f32.mrb[0].mxu0
        %926 = vdwg.mxu0
        %927 = vmatprep.subr.bf16.mxu0 0
        %928 = vmatpush1.bf16.msra.mxu0 %v843
        %929 = vmatprep.subr.bf16.mxu0 0
        %930 = vmatpush1.bf16.msra.mxu0 0
        %931 = vmatprep.subr.bf16.mxu0 0
        %932 = vmatpush1.bf16.msra.mxu0 0
        %933 = vmatprep.subr.bf16.mxu0 0
        %934 = vmatpush1.bf16.msra.mxu0 0
        %935 = vmatprep.subr.bf16.mxu0 0
        %936 = vmatpush1.bf16.msra.mxu0 0
        %937 = vmatprep.subr.bf16.mxu0 0
        %938 = vmatpush1.bf16.msra.mxu0 0
        %939 = vmatprep.subr.bf16.mxu0 0
        %940 = vmatpush1.bf16.msra.mxu0 0
        %941 = vmatprep.subr.bf16.mxu0 0
        %942 = vmatpush1.bf16.msra.mxu0 0
        %943 = vmatprep.subr.bf16.mxu0 0
        %944 = vmatpush1.bf16.msra.mxu0 0
        %945 = vmatprep.subr.bf16.mxu0 0
        %946 = vmatpush1.bf16.msra.mxu0 0
        %947 = vmatprep.subr.bf16.mxu0 0
        %948 = vmatpush1.bf16.msra.mxu0 0
        %949 = vmatprep.subr.bf16.mxu0 0
        %950 = vmatpush1.bf16.msra.mxu0 0
        %951 = vmatprep.subr.bf16.mxu0 0
        %952 = vmatpush1.bf16.msra.mxu0 0
        %953 = vmatprep.subr.bf16.mxu0 0
        %954 = vmatpush1.bf16.msra.mxu0 0
        %955 = vmatprep.subr.bf16.mxu0 0
        %956 = vmatpush1.bf16.msra.mxu0 0
        %957 = vmatprep.subr.bf16.mxu0 0
        %958 = vmatpush1.bf16.msra.mxu0 0
        %959 = vmatprep.mubr.bf16.mxu0 0
        %960 = vmatmul.mubr.bf16.gmra.mrb[0].mxu0 %v828
        %v961 = vpop.f32.mrb[0].mxu0
        %v962 = vadd.f32 %v679, %v961
        %v963 = vpop.f32.mrb[0].mxu0
        %v964 = vpop.f32.mrb[0].mxu0
        %v965 = vpop.f32.mrb[0].mxu0
        %966 = vdwg.mxu0
        %v967 = vmax.f32 %v740, 0.0
        %v968 = vmax.f32 %v742, 0.0
        %v969 = vmax.f32 %v781, 0.0
        %v970 = vmax.f32 %v783, 0.0
        %v971 = vmax.f32 %v822, 0.0
        %v972 = vmax.f32 %v880, 0.0
        %v973 = vmax.f32 %v882, 0.0
        %v974 = vmax.f32 %v921, 0.0
        %v975 = vmax.f32 %v923, 0.0
        %v976 = vmax.f32 %v962, 0.0
        %v977 = vpack.c.bf16 %v635, %v634
        %v978 = vld [vmem:[%s5] sm:$0x1f]
        %v979 = vld [vmem:[%s5 + $0x8] sm:$0x1f]
        %v980 = vld [vmem:[%s5 + $0x10] sm:$0x1f]
        %v981 = vld [vmem:[%s5 + $0x18] sm:$0x1f]
        %v982 = vld [vmem:[%s5 + $0x20] sm:$0x1f]
        %v983 = vpack.c.bf16 %v978, %v978
        %v984 = vpack.c.bf16 %v979, %v979
        %v985 = vpack.c.bf16 %v980, %v980
        %v986 = vpack.c.bf16 %v981, %v981
        %v987 = vpack.c.bf16 %v982, %v982
        %vm988 = vcmask 39936
        %v990 = vsel %vm988, %v977, 0
        %vm992 = vcmask 1041408
        %vm993 = vcmask 1042432
        %v994 = vsel %vm992, 4294967295, 65535
        %v995 = vsel %vm993, %v994, 0
        %v997 = vand.u32 %v983, %v995
        %v1000 = vand.u32 %v984, %v995
        %v1003 = vand.u32 %v985, %v995
        %v1006 = vand.u32 %v986, %v995
        %v1009 = vand.u32 %v987, %v995
        %1011 = vmatprep.subr.bf16.mxu0 %v1000
        %1012 = vmatpush1.bf16.msra.mxu0 %v997
        %1013 = vmatprep.subr.bf16.mxu0 0
        %1014 = vmatpush1.bf16.msra.mxu0 0
        %1015 = vmatprep.subr.bf16.mxu0 0
        %1016 = vmatpush1.bf16.msra.mxu0 0
        %1017 = vmatprep.subr.bf16.mxu0 0
        %1018 = vmatpush1.bf16.msra.mxu0 0
        %1019 = vmatprep.subr.bf16.mxu0 0
        %1020 = vmatpush1.bf16.msra.mxu0 0
        %1021 = vmatprep.subr.bf16.mxu0 0
        %1022 = vmatpush1.bf16.msra.mxu0 0
        %1023 = vmatprep.subr.bf16.mxu0 0
        %1024 = vmatpush1.bf16.msra.mxu0 0
        %1025 = vmatprep.subr.bf16.mxu0 0
        %1026 = vmatpush1.bf16.msra.mxu0 0
        %1027 = vmatprep.subr.bf16.mxu0 0
        %1028 = vmatpush1.bf16.msra.mxu0 0
        %1029 = vmatprep.subr.bf16.mxu0 0
        %1030 = vmatpush1.bf16.msra.mxu0 0
        %1031 = vmatprep.subr.bf16.mxu0 0
        %1032 = vmatpush1.bf16.msra.mxu0 0
        %1033 = vmatprep.subr.bf16.mxu0 0
        %1034 = vmatpush1.bf16.msra.mxu0 0
        %1035 = vmatprep.subr.bf16.mxu0 0
        %1036 = vmatpush1.bf16.msra.mxu0 0
        %1037 = vmatprep.subr.bf16.mxu0 0
        %1038 = vmatpush1.bf16.msra.mxu0 0
        %1039 = vmatprep.subr.bf16.mxu0 0
        %1040 = vmatpush1.bf16.msra.mxu0 0
        %1041 = vmatprep.subr.bf16.mxu0 0
        %1042 = vmatpush1.bf16.msra.mxu0 0
        %1043 = vmatprep.mubr.bf16.mxu0 0
        %1044 = vmatmul.mubr.bf16.gmra.mrb[0].mxu0 %v990
        %v1045 = vpop.f32.mrb[0].mxu0
        %v1046 = vadd.f32 0.0, %v1045
        %v1047 = vpop.f32.mrb[0].mxu0
        %v1048 = vadd.f32 0.0, %v1047
        %v1049 = vpop.f32.mrb[0].mxu0
        %v1050 = vadd.f32 0.0, %v1049
        %v1051 = vpop.f32.mrb[0].mxu0
        %v1052 = vadd.f32 0.0, %v1051
        %1053 = vdwg.mxu0
        %1054 = vmatprep.subr.bf16.mxu0 %v1006
        %1055 = vmatpush1.bf16.msra.mxu0 %v1003
        %1056 = vmatprep.subr.bf16.mxu0 0
        %1057 = vmatpush1.bf16.msra.mxu0 0
        %1058 = vmatprep.subr.bf16.mxu0 0
        %1059 = vmatpush1.bf16.msra.mxu0 0
        %1060 = vmatprep.subr.bf16.mxu0 0
        %1061 = vmatpush1.bf16.msra.mxu0 0
        %1062 = vmatprep.subr.bf16.mxu0 0
        %1063 = vmatpush1.bf16.msra.mxu0 0
        %1064 = vmatprep.subr.bf16.mxu0 0
        %1065 = vmatpush1.bf16.msra.mxu0 0
        %1066 = vmatprep.subr.bf16.mxu0 0
        %1067 = vmatpush1.bf16.msra.mxu0 0
        %1068 = vmatprep.subr.bf16.mxu0 0
        %1069 = vmatpush1.bf16.msra.mxu0 0
        %1070 = vmatprep.subr.bf16.mxu0 0
        %1071 = vmatpush1.bf16.msra.mxu0 0
        %1072 = vmatprep.subr.bf16.mxu0 0
        %1073 = vmatpush1.bf16.msra.mxu0 0
        %1074 = vmatprep.subr.bf16.mxu0 0
        %1075 = vmatpush1.bf16.msra.mxu0 0
        %1076 = vmatprep.subr.bf16.mxu0 0
        %1077 = vmatpush1.bf16.msra.mxu0 0
        %1078 = vmatprep.subr.bf16.mxu0 0
        %1079 = vmatpush1.bf16.msra.mxu0 0
        %1080 = vmatprep.subr.bf16.mxu0 0
        %1081 = vmatpush1.bf16.msra.mxu0 0
        %1082 = vmatprep.subr.bf16.mxu0 0
        %1083 = vmatpush1.bf16.msra.mxu0 0
        %1084 = vmatprep.subr.bf16.mxu0 0
        %1085 = vmatpush1.bf16.msra.mxu0 0
        %1086 = vmatprep.mubr.bf16.mxu0 0
        %1087 = vmatmul.mubr.bf16.gmra.mrb[0].mxu0 %v990
        %v1088 = vpop.f32.mrb[0].mxu0
        %v1089 = vadd.f32 0.0, %v1088
        %v1090 = vpop.f32.mrb[0].mxu0
        %v1091 = vadd.f32 0.0, %v1090
        %v1092 = vpop.f32.mrb[0].mxu0
        %v1093 = vadd.f32 0.0, %v1092
        %v1094 = vpop.f32.mrb[0].mxu0
        %v1095 = vadd.f32 0.0, %v1094
        %1096 = vdwg.mxu0
        %1097 = vmatprep.subr.bf16.mxu0 0
        %1098 = vmatpush1.bf16.msra.mxu0 %v1009
        %1099 = vmatprep.subr.bf16.mxu0 0
        %1100 = vmatpush1.bf16.msra.mxu0 0
        %1101 = vmatprep.subr.bf16.mxu0 0
        %1102 = vmatpush1.bf16.msra.mxu0 0
        %1103 = vmatprep.subr.bf16.mxu0 0
        %1104 = vmatpush1.bf16.msra.mxu0 0
        %1105 = vmatprep.subr.bf16.mxu0 0
        %1106 = vmatpush1.bf16.msra.mxu0 0
        %1107 = vmatprep.subr.bf16.mxu0 0
        %1108 = vmatpush1.bf16.msra.mxu0 0
        %1109 = vmatprep.subr.bf16.mxu0 0
        %1110 = vmatpush1.bf16.msra.mxu0 0
        %1111 = vmatprep.subr.bf16.mxu0 0
        %1112 = vmatpush1.bf16.msra.mxu0 0
        %1113 = vmatprep.subr.bf16.mxu0 0
        %1114 = vmatpush1.bf16.msra.mxu0 0
        %1115 = vmatprep.subr.bf16.mxu0 0
        %1116 = vmatpush1.bf16.msra.mxu0 0
        %1117 = vmatprep.subr.bf16.mxu0 0
        %1118 = vmatpush1.bf16.msra.mxu0 0
        %1119 = vmatprep.subr.bf16.mxu0 0
        %1120 = vmatpush1.bf16.msra.mxu0 0
        %1121 = vmatprep.subr.bf16.mxu0 0
        %1122 = vmatpush1.bf16.msra.mxu0 0
        %1123 = vmatprep.subr.bf16.mxu0 0
        %1124 = vmatpush1.bf16.msra.mxu0 0
        %1125 = vmatprep.subr.bf16.mxu0 0
        %1126 = vmatpush1.bf16.msra.mxu0 0
        %1127 = vmatprep.subr.bf16.mxu0 0
        %1128 = vmatpush1.bf16.msra.mxu0 0
        %1129 = vmatprep.mubr.bf16.mxu0 0
        %1130 = vmatmul.mubr.bf16.gmra.mrb[0].mxu0 %v990
        %v1131 = vpop.f32.mrb[0].mxu0
        %v1132 = vadd.f32 0.0, %v1131
        %v1133 = vpop.f32.mrb[0].mxu0
        %v1134 = vpop.f32.mrb[0].mxu0
        %v1135 = vadd.f32 0.0, %v1134
        %v1136 = vpop.f32.mrb[0].mxu0
        %1137 = vdwg.mxu0
        %v1138 = vmul.f32 %v967, %v1046
        %v1139 = vmul.f32 %v968, %v1048
        %v1140 = vmul.f32 %v969, %v1089
        %v1141 = vmul.f32 %v970, %v1091
        %v1142 = vmul.f32 %v971, %v1132
        %v1143 = vmul.f32 %v972, %v1050
        %v1144 = vmul.f32 %v973, %v1052
        %v1145 = vmul.f32 %v974, %v1093
        %v1146 = vmul.f32 %v975, %v1095
        %v1147 = vmul.f32 %v976, %v1135
        %v1148 = vld [vmem:[#allocation3] sm:$0xff]
        %v1149 = vld [vmem:[#allocation3 + $0x8] sm:$0xff]
        %v1150 = vld [vmem:[#allocation3 + $0x10] sm:$0xff]
        %v1151 = vld [vmem:[#allocation3 + $0x18] sm:$0xff]
        %v1152 = vld [vmem:[#allocation3 + $0x20] sm:$0xff]
        %v1153 = vld [vmem:[#allocation3 + $0x28] sm:$0xff]
        %v1154 = vld [vmem:[#allocation3 + $0x30] sm:$0xff]
        %v1155 = vld [vmem:[#allocation3 + $0x38] sm:$0xff]
        %v1156 = vld [vmem:[#allocation3 + $0x40] sm:$0xff]
        %v1157 = vld [vmem:[#allocation3 + $0x48] sm:$0xff]
        %v1158 = vpack.c.bf16 %v1138, %v1138
        %v1159 = vpack.c.bf16 %v1139, %v1139
        %v1160 = vpack.c.bf16 %v1140, %v1140
        %v1161 = vpack.c.bf16 %v1141, %v1141
        %v1162 = vpack.c.bf16 %v1142, %v1142
        %v1163 = vpack.c.bf16 %v1143, %v1143
        %v1164 = vpack.c.bf16 %v1144, %v1144
        %v1165 = vpack.c.bf16 %v1145, %v1145
        %v1166 = vpack.c.bf16 %v1146, %v1146
        %v1167 = vpack.c.bf16 %v1147, %v1147
        %1168 = vxpose.xlu0.c.b16.start [1/8] %v636, 128
        %1169 = vxpose.xlu0.c.b16.cont [2/8] 0, 128
        %1170 = vxpose.xlu0.c.b16.cont [3/8] 0, 128
        %1171 = vxpose.xlu0.c.b16.cont [4/8] 0, 128
        %1172 = vxpose.xlu0.c.b16.cont [5/8] 0, 128
        %1173 = vxpose.xlu0.c.b16.cont [6/8] 0, 128
        %1174 = vxpose.xlu0.c.b16.cont [7/8] 0, 128
        %1175 = vxpose.xlu0.c.b16.end [8/8] 0, 128
        %v1176 = vpop.trf.xlu0
        %v1177 = vpop.trf.xlu0
        %v1178 = vpop.trf.xlu0
        %v1179 = vpop.trf.xlu0
        %v1180 = vpop.trf.xlu0
        %v1181 = vpop.trf.xlu0
        %v1182 = vpop.trf.xlu0
        %v1183 = vpop.trf.xlu0
        %v1185 = vsel %vm685, %v1176, 0
        %v1188 = vsel %vm689, %v1158, 0
        %v1191 = vsel %vm689, %v1159, 0
        %v1194 = vsel %vm689, %v1160, 0
        %v1197 = vsel %vm689, %v1161, 0
        %v1200 = vsel %vm689, %v1162, 0
        %1202 = vmatprep.subr.bf16.mxu0 %v1191
        %1203 = vmatpush1.bf16.msra.mxu0 %v1188
        %1204 = vmatprep.subr.bf16.mxu0 0
        %1205 = vmatpush1.bf16.msra.mxu0 0
        %1206 = vmatprep.subr.bf16.mxu0 0
        %1207 = vmatpush1.bf16.msra.mxu0 0
        %1208 = vmatprep.subr.bf16.mxu0 0
        %1209 = vmatpush1.bf16.msra.mxu0 0
        %1210 = vmatprep.subr.bf16.mxu0 0
        %1211 = vmatpush1.bf16.msra.mxu0 0
        %1212 = vmatprep.subr.bf16.mxu0 0
        %1213 = vmatpush1.bf16.msra.mxu0 0
        %1214 = vmatprep.subr.bf16.mxu0 0
        %1215 = vmatpush1.bf16.msra.mxu0 0
        %1216 = vmatprep.subr.bf16.mxu0 0
        %1217 = vmatpush1.bf16.msra.mxu0 0
        %1218 = vmatprep.subr.bf16.mxu0 0
        %1219 = vmatpush1.bf16.msra.mxu0 0
        %1220 = vmatprep.subr.bf16.mxu0 0
        %1221 = vmatpush1.bf16.msra.mxu0 0
        %1222 = vmatprep.subr.bf16.mxu0 0
        %1223 = vmatpush1.bf16.msra.mxu0 0
        %1224 = vmatprep.subr.bf16.mxu0 0
        %1225 = vmatpush1.bf16.msra.mxu0 0
        %1226 = vmatprep.subr.bf16.mxu0 0
        %1227 = vmatpush1.bf16.msra.mxu0 0
        %1228 = vmatprep.subr.bf16.mxu0 0
        %1229 = vmatpush1.bf16.msra.mxu0 0
        %1230 = vmatprep.subr.bf16.mxu0 0
        %1231 = vmatpush1.bf16.msra.mxu0 0
        %1232 = vmatprep.subr.bf16.mxu0 0
        %1233 = vmatpush1.bf16.msra.mxu0 0
        %1234 = vmatprep.mubr.bf16.mxu0 0
        %1235 = vmatmul.mubr.bf16.gmra.mrb[0].mxu0 %v1185
        %v1236 = vpop.f32.mrb[0].mxu0
        %v1237 = vadd.f32 0.0, %v1236
        %v1238 = vpop.f32.mrb[0].mxu0
        %v1239 = vadd.f32 0.0, %v1238
        %v1240 = vpop.f32.mrb[0].mxu0
        %v1241 = vpop.f32.mrb[0].mxu0
        %1242 = vdwg.mxu0
        %1243 = vmatprep.subr.bf16.mxu0 %v1197
        %1244 = vmatpush1.bf16.msra.mxu0 %v1194
        %1245 = vmatprep.subr.bf16.mxu0 0
        %1246 = vmatpush1.bf16.msra.mxu0 0
        %1247 = vmatprep.subr.bf16.mxu0 0
        %1248 = vmatpush1.bf16.msra.mxu0 0
        %1249 = vmatprep.subr.bf16.mxu0 0
        %1250 = vmatpush1.bf16.msra.mxu0 0
        %1251 = vmatprep.subr.bf16.mxu0 0
        %1252 = vmatpush1.bf16.msra.mxu0 0
        %1253 = vmatprep.subr.bf16.mxu0 0
        %1254 = vmatpush1.bf16.msra.mxu0 0
        %1255 = vmatprep.subr.bf16.mxu0 0
        %1256 = vmatpush1.bf16.msra.mxu0 0
        %1257 = vmatprep.subr.bf16.mxu0 0
        %1258 = vmatpush1.bf16.msra.mxu0 0
        %1259 = vmatprep.subr.bf16.mxu0 0
        %1260 = vmatpush1.bf16.msra.mxu0 0
        %1261 = vmatprep.subr.bf16.mxu0 0
        %1262 = vmatpush1.bf16.msra.mxu0 0
        %1263 = vmatprep.subr.bf16.mxu0 0
        %1264 = vmatpush1.bf16.msra.mxu0 0
        %1265 = vmatprep.subr.bf16.mxu0 0
        %1266 = vmatpush1.bf16.msra.mxu0 0
        %1267 = vmatprep.subr.bf16.mxu0 0
        %1268 = vmatpush1.bf16.msra.mxu0 0
        %1269 = vmatprep.subr.bf16.mxu0 0
        %1270 = vmatpush1.bf16.msra.mxu0 0
        %1271 = vmatprep.subr.bf16.mxu0 0
        %1272 = vmatpush1.bf16.msra.mxu0 0
        %1273 = vmatprep.subr.bf16.mxu0 0
        %1274 = vmatpush1.bf16.msra.mxu0 0
        %1275 = vmatprep.mubr.bf16.mxu0 0
        %1276 = vmatmul.mubr.bf16.gmra.mrb[0].mxu0 %v1185
        %v1277 = vpop.f32.mrb[0].mxu0
        %v1278 = vadd.f32 0.0, %v1277
        %v1279 = vpop.f32.mrb[0].mxu0
        %v1280 = vadd.f32 0.0, %v1279
        %v1281 = vpop.f32.mrb[0].mxu0
        %v1282 = vpop.f32.mrb[0].mxu0
        %1283 = vdwg.mxu0
        %1284 = vmatprep.subr.bf16.mxu0 0
        %1285 = vmatpush1.bf16.msra.mxu0 %v1200
        %1286 = vmatprep.subr.bf16.mxu0 0
        %1287 = vmatpush1.bf16.msra.mxu0 0
        %1288 = vmatprep.subr.bf16.mxu0 0
        %1289 = vmatpush1.bf16.msra.mxu0 0
        %1290 = vmatprep.subr.bf16.mxu0 0
        %1291 = vmatpush1.bf16.msra.mxu0 0
        %1292 = vmatprep.subr.bf16.mxu0 0
        %1293 = vmatpush1.bf16.msra.mxu0 0
        %1294 = vmatprep.subr.bf16.mxu0 0
        %1295 = vmatpush1.bf16.msra.mxu0 0
        %1296 = vmatprep.subr.bf16.mxu0 0
        %1297 = vmatpush1.bf16.msra.mxu0 0
        %1298 = vmatprep.subr.bf16.mxu0 0
        %1299 = vmatpush1.bf16.msra.mxu0 0
        %1300 = vmatprep.subr.bf16.mxu0 0
        %1301 = vmatpush1.bf16.msra.mxu0 0
        %1302 = vmatprep.subr.bf16.mxu0 0
        %1303 = vmatpush1.bf16.msra.mxu0 0
        %1304 = vmatprep.subr.bf16.mxu0 0
        %1305 = vmatpush1.bf16.msra.mxu0 0
        %1306 = vmatprep.subr.bf16.mxu0 0
        %1307 = vmatpush1.bf16.msra.mxu0 0
        %1308 = vmatprep.subr.bf16.mxu0 0
        %1309 = vmatpush1.bf16.msra.mxu0 0
        %1310 = vmatprep.subr.bf16.mxu0 0
        %1311 = vmatpush1.bf16.msra.mxu0 0
        %1312 = vmatprep.subr.bf16.mxu0 0
        %1313 = vmatpush1.bf16.msra.mxu0 0
        %1314 = vmatprep.subr.bf16.mxu0 0
        %1315 = vmatpush1.bf16.msra.mxu0 0
        %1316 = vmatprep.mubr.bf16.mxu0 0
        %1317 = vmatmul.mubr.bf16.gmra.mrb[0].mxu0 %v1185
        %v1318 = vpop.f32.mrb[0].mxu0
        %v1319 = vadd.f32 0.0, %v1318
        %v1320 = vpop.f32.mrb[0].mxu0
        %v1321 = vpop.f32.mrb[0].mxu0
        %v1322 = vpop.f32.mrb[0].mxu0
        %1323 = vdwg.mxu0
        %1324 = vxpose.xlu0.c.b16.start [1/8] %v637, 128
        %1325 = vxpose.xlu0.c.b16.cont [2/8] 0, 128
        %1326 = vxpose.xlu0.c.b16.cont [3/8] 0, 128
        %1327 = vxpose.xlu0.c.b16.cont [4/8] 0, 128
        %1328 = vxpose.xlu0.c.b16.cont [5/8] 0, 128
        %1329 = vxpose.xlu0.c.b16.cont [6/8] 0, 128
        %1330 = vxpose.xlu0.c.b16.cont [7/8] 0, 128
        %1331 = vxpose.xlu0.c.b16.end [8/8] 0, 128
        %v1332 = vpop.trf.xlu0
        %v1333 = vpop.trf.xlu0
        %v1334 = vpop.trf.xlu0
        %v1335 = vpop.trf.xlu0
        %v1336 = vpop.trf.xlu0
        %v1337 = vpop.trf.xlu0
        %v1338 = vpop.trf.xlu0
        %v1339 = vpop.trf.xlu0
        %v1341 = vsel %vm685, %v1332, 0
        %v1344 = vsel %vm689, %v1163, 0
        %v1347 = vsel %vm689, %v1164, 0
        %v1350 = vsel %vm689, %v1165, 0
        %v1353 = vsel %vm689, %v1166, 0
        %v1356 = vsel %vm689, %v1167, 0
        %1358 = vmatprep.subr.bf16.mxu0 %v1347
        %1359 = vmatpush1.bf16.msra.mxu0 %v1344
        %1360 = vmatprep.subr.bf16.mxu0 0
        %1361 = vmatpush1.bf16.msra.mxu0 0
        %1362 = vmatprep.subr.bf16.mxu0 0
        %1363 = vmatpush1.bf16.msra.mxu0 0
        %1364 = vmatprep.subr.bf16.mxu0 0
        %1365 = vmatpush1.bf16.msra.mxu0 0
        %1366 = vmatprep.subr.bf16.mxu0 0
        %1367 = vmatpush1.bf16.msra.mxu0 0
        %1368 = vmatprep.subr.bf16.mxu0 0
        %1369 = vmatpush1.bf16.msra.mxu0 0
        %1370 = vmatprep.subr.bf16.mxu0 0
        %1371 = vmatpush1.bf16.msra.mxu0 0
        %1372 = vmatprep.subr.bf16.mxu0 0
        %1373 = vmatpush1.bf16.msra.mxu0 0
        %1374 = vmatprep.subr.bf16.mxu0 0
        %1375 = vmatpush1.bf16.msra.mxu0 0
        %1376 = vmatprep.subr.bf16.mxu0 0
        %1377 = vmatpush1.bf16.msra.mxu0 0
        %1378 = vmatprep.subr.bf16.mxu0 0
        %1379 = vmatpush1.bf16.msra.mxu0 0
        %1380 = vmatprep.subr.bf16.mxu0 0
        %1381 = vmatpush1.bf16.msra.mxu0 0
        %1382 = vmatprep.subr.bf16.mxu0 0
        %1383 = vmatpush1.bf16.msra.mxu0 0
        %1384 = vmatprep.subr.bf16.mxu0 0
        %1385 = vmatpush1.bf16.msra.mxu0 0
        %1386 = vmatprep.subr.bf16.mxu0 0
        %1387 = vmatpush1.bf16.msra.mxu0 0
        %1388 = vmatprep.subr.bf16.mxu0 0
        %1389 = vmatpush1.bf16.msra.mxu0 0
        %1390 = vmatprep.mubr.bf16.mxu0 0
        %1391 = vmatmul.mubr.bf16.gmra.mrb[0].mxu0 %v1341
        %v1392 = vpop.f32.mrb[0].mxu0
        %v1393 = vadd.f32 0.0, %v1392
        %v1394 = vpop.f32.mrb[0].mxu0
        %v1395 = vadd.f32 0.0, %v1394
        %v1396 = vpop.f32.mrb[0].mxu0
        %v1397 = vpop.f32.mrb[0].mxu0
        %1398 = vdwg.mxu0
        %1399 = vmatprep.subr.bf16.mxu0 %v1353
        %1400 = vmatpush1.bf16.msra.mxu0 %v1350
        %1401 = vmatprep.subr.bf16.mxu0 0
        %1402 = vmatpush1.bf16.msra.mxu0 0
        %1403 = vmatprep.subr.bf16.mxu0 0
        %1404 = vmatpush1.bf16.msra.mxu0 0
        %1405 = vmatprep.subr.bf16.mxu0 0
        %1406 = vmatpush1.bf16.msra.mxu0 0
        %1407 = vmatprep.subr.bf16.mxu0 0
        %1408 = vmatpush1.bf16.msra.mxu0 0
        %1409 = vmatprep.subr.bf16.mxu0 0
        %1410 = vmatpush1.bf16.msra.mxu0 0
        %1411 = vmatprep.subr.bf16.mxu0 0
        %1412 = vmatpush1.bf16.msra.mxu0 0
        %1413 = vmatprep.subr.bf16.mxu0 0
        %1414 = vmatpush1.bf16.msra.mxu0 0
        %1415 = vmatprep.subr.bf16.mxu0 0
        %1416 = vmatpush1.bf16.msra.mxu0 0
        %1417 = vmatprep.subr.bf16.mxu0 0
        %1418 = vmatpush1.bf16.msra.mxu0 0
        %1419 = vmatprep.subr.bf16.mxu0 0
        %1420 = vmatpush1.bf16.msra.mxu0 0
        %1421 = vmatprep.subr.bf16.mxu0 0
        %1422 = vmatpush1.bf16.msra.mxu0 0
        %1423 = vmatprep.subr.bf16.mxu0 0
        %1424 = vmatpush1.bf16.msra.mxu0 0
        %1425 = vmatprep.subr.bf16.mxu0 0
        %1426 = vmatpush1.bf16.msra.mxu0 0
        %1427 = vmatprep.subr.bf16.mxu0 0
        %1428 = vmatpush1.bf16.msra.mxu0 0
        %1429 = vmatprep.subr.bf16.mxu0 0
        %1430 = vmatpush1.bf16.msra.mxu0 0
        %1431 = vmatprep.mubr.bf16.mxu0 0
        %1432 = vmatmul.mubr.bf16.gmra.mrb[0].mxu0 %v1341
        %v1433 = vpop.f32.mrb[0].mxu0
        %v1434 = vadd.f32 0.0, %v1433
        %v1435 = vpop.f32.mrb[0].mxu0
        %v1436 = vadd.f32 0.0, %v1435
        %v1437 = vpop.f32.mrb[0].mxu0
        %v1438 = vpop.f32.mrb[0].mxu0
        %1439 = vdwg.mxu0
        %1440 = vmatprep.subr.bf16.mxu0 0
        %1441 = vmatpush1.bf16.msra.mxu0 %v1356
        %1442 = vmatprep.subr.bf16.mxu0 0
        %1443 = vmatpush1.bf16.msra.mxu0 0
        %1444 = vmatprep.subr.bf16.mxu0 0
        %1445 = vmatpush1.bf16.msra.mxu0 0
        %1446 = vmatprep.subr.bf16.mxu0 0
        %1447 = vmatpush1.bf16.msra.mxu0 0
        %1448 = vmatprep.subr.bf16.mxu0 0
        %1449 = vmatpush1.bf16.msra.mxu0 0
        %1450 = vmatprep.subr.bf16.mxu0 0
        %1451 = vmatpush1.bf16.msra.mxu0 0
        %1452 = vmatprep.subr.bf16.mxu0 0
        %1453 = vmatpush1.bf16.msra.mxu0 0
        %1454 = vmatprep.subr.bf16.mxu0 0
        %1455 = vmatpush1.bf16.msra.mxu0 0
        %1456 = vmatprep.subr.bf16.mxu0 0
        %1457 = vmatpush1.bf16.msra.mxu0 0
        %1458 = vmatprep.subr.bf16.mxu0 0
        %1459 = vmatpush1.bf16.msra.mxu0 0
        %1460 = vmatprep.subr.bf16.mxu0 0
        %1461 = vmatpush1.bf16.msra.mxu0 0
        %1462 = vmatprep.subr.bf16.mxu0 0
        %1463 = vmatpush1.bf16.msra.mxu0 0
        %1464 = vmatprep.subr.bf16.mxu0 0
        %1465 = vmatpush1.bf16.msra.mxu0 0
        %1466 = vmatprep.subr.bf16.mxu0 0
        %1467 = vmatpush1.bf16.msra.mxu0 0
        %1468 = vmatprep.subr.bf16.mxu0 0
        %1469 = vmatpush1.bf16.msra.mxu0 0
        %1470 = vmatprep.subr.bf16.mxu0 0
        %1471 = vmatpush1.bf16.msra.mxu0 0
        %1472 = vmatprep.mubr.bf16.mxu0 0
        %1473 = vmatmul.mubr.bf16.gmra.mrb[0].mxu0 %v1341
        %v1474 = vpop.f32.mrb[0].mxu0
        %v1475 = vadd.f32 0.0, %v1474
        %v1476 = vpop.f32.mrb[0].mxu0
        %v1477 = vpop.f32.mrb[0].mxu0
        %v1478 = vpop.f32.mrb[0].mxu0
        %1479 = vdwg.mxu0
        %v1480 = vadd.f32 %v1148, %v1237
        %v1481 = vadd.f32 %v1149, %v1239
        %v1482 = vadd.f32 %v1150, %v1278
        %v1483 = vadd.f32 %v1151, %v1280
        %v1484 = vadd.f32 %v1152, %v1319
        %v1485 = vadd.f32 %v1153, %v1393
        %v1486 = vadd.f32 %v1154, %v1395
        %v1487 = vadd.f32 %v1155, %v1434
        %v1488 = vadd.f32 %v1156, %v1436
        %v1489 = vadd.f32 %v1157, %v1475
        %1490 = vst [vmem:[#allocation3] sm:$0xff] %v1480
        %1491 = vst [vmem:[#allocation3 + $0x8] sm:$0xff] %v1481
        %1492 = vst [vmem:[#allocation3 + $0x10] sm:$0xff] %v1482
        %1493 = vst [vmem:[#allocation3 + $0x18] sm:$0xff] %v1483
        %1494 = vst [vmem:[#allocation3 + $0x20] sm:$0xff] %v1484
        %1495 = vst [vmem:[#allocation3 + $0x28] sm:$0xff] %v1485
        %1496 = vst [vmem:[#allocation3 + $0x30] sm:$0xff] %v1486
        %1497 = vst [vmem:[#allocation3 + $0x38] sm:$0xff] %v1487
        %1498 = vst [vmem:[#allocation3 + $0x40] sm:$0xff] %v1488
        %1499 = vst [vmem:[#allocation3 + $0x48] sm:$0xff] %v1489
        %v1500 = vld [vmem:[#allocation4] sm:$0xff]
        %v1501 = vld [vmem:[#allocation4 + $0x8] sm:$0xff]
        %v1502 = vpack.c.bf16 %v634, %v634
        %v1503 = vpack.c.bf16 %v635, %v635
        %v1505 = vsel %vm689, %v1502, 0
        %1507 = vmatprep.subr.bf16.mxu0 0
        %1508 = vmatpush1.bf16.msra.mxu0 %v1505
        %1509 = vmatprep.subr.bf16.mxu0 0
        %1510 = vmatpush1.bf16.msra.mxu0 0
        %1511 = vmatprep.subr.bf16.mxu0 0
        %1512 = vmatpush1.bf16.msra.mxu0 0
        %1513 = vmatprep.subr.bf16.mxu0 0
        %1514 = vmatpush1.bf16.msra.mxu0 0
        %1515 = vmatprep.subr.bf16.mxu0 0
        %1516 = vmatpush1.bf16.msra.mxu0 0
        %1517 = vmatprep.subr.bf16.mxu0 0
        %1518 = vmatpush1.bf16.msra.mxu0 0
        %1519 = vmatprep.subr.bf16.mxu0 0
        %1520 = vmatpush1.bf16.msra.mxu0 0
        %1521 = vmatprep.subr.bf16.mxu0 0
        %1522 = vmatpush1.bf16.msra.mxu0 0
        %1523 = vmatprep.subr.bf16.mxu0 0
        %1524 = vmatpush1.bf16.msra.mxu0 0
        %1525 = vmatprep.subr.bf16.mxu0 0
        %1526 = vmatpush1.bf16.msra.mxu0 0
        %1527 = vmatprep.subr.bf16.mxu0 0
        %1528 = vmatpush1.bf16.msra.mxu0 0
        %1529 = vmatprep.subr.bf16.mxu0 0
        %1530 = vmatpush1.bf16.msra.mxu0 0
        %1531 = vmatprep.subr.bf16.mxu0 0
        %1532 = vmatpush1.bf16.msra.mxu0 0
        %1533 = vmatprep.subr.bf16.mxu0 0
        %1534 = vmatpush1.bf16.msra.mxu0 0
        %1535 = vmatprep.subr.bf16.mxu0 0
        %1536 = vmatpush1.bf16.msra.mxu0 0
        %1537 = vmatprep.subr.bf16.mxu0 0
        %1538 = vmatpush1.bf16.msra.mxu0 0
        %1539 = vmatprep.mubr.bf16.mxu0 0
        %1540 = vmatmul.mubr.bf16.gmra.mrb[0].mxu0 %v1185
        %v1541 = vpop.f32.mrb[0].mxu0
        %v1542 = vadd.f32 0.0, %v1541
        %v1543 = vpop.f32.mrb[0].mxu0
        %v1544 = vpop.f32.mrb[0].mxu0
        %v1545 = vpop.f32.mrb[0].mxu0
        %1546 = vdwg.mxu0
        %v1548 = vsel %vm689, %v1503, 0
        %1550 = vmatprep.subr.bf16.mxu0 0
        %1551 = vmatpush1.bf16.msra.mxu0 %v1548
        %1552 = vmatprep.subr.bf16.mxu0 0
        %1553 = vmatpush1.bf16.msra.mxu0 0
        %1554 = vmatprep.subr.bf16.mxu0 0
        %1555 = vmatpush1.bf16.msra.mxu0 0
        %1556 = vmatprep.subr.bf16.mxu0 0
        %1557 = vmatpush1.bf16.msra.mxu0 0
        %1558 = vmatprep.subr.bf16.mxu0 0
        %1559 = vmatpush1.bf16.msra.mxu0 0
        %1560 = vmatprep.subr.bf16.mxu0 0
        %1561 = vmatpush1.bf16.msra.mxu0 0
        %1562 = vmatprep.subr.bf16.mxu0 0
        %1563 = vmatpush1.bf16.msra.mxu0 0
        %1564 = vmatprep.subr.bf16.mxu0 0
        %1565 = vmatpush1.bf16.msra.mxu0 0
        %1566 = vmatprep.subr.bf16.mxu0 0
        %1567 = vmatpush1.bf16.msra.mxu0 0
        %1568 = vmatprep.subr.bf16.mxu0 0
        %1569 = vmatpush1.bf16.msra.mxu0 0
        %1570 = vmatprep.subr.bf16.mxu0 0
        %1571 = vmatpush1.bf16.msra.mxu0 0
        %1572 = vmatprep.subr.bf16.mxu0 0
        %1573 = vmatpush1.bf16.msra.mxu0 0
        %1574 = vmatprep.subr.bf16.mxu0 0
        %1575 = vmatpush1.bf16.msra.mxu0 0
        %1576 = vmatprep.subr.bf16.mxu0 0
        %1577 = vmatpush1.bf16.msra.mxu0 0
        %1578 = vmatprep.subr.bf16.mxu0 0
        %1579 = vmatpush1.bf16.msra.mxu0 0
        %1580 = vmatprep.subr.bf16.mxu0 0
        %1581 = vmatpush1.bf16.msra.mxu0 0
        %1582 = vmatprep.mubr.bf16.mxu0 0
        %1583 = vmatmul.mubr.bf16.gmra.mrb[0].mxu0 %v1341
        %v1584 = vpop.f32.mrb[0].mxu0
        %v1585 = vadd.f32 0.0, %v1584
        %v1586 = vpop.f32.mrb[0].mxu0
        %v1587 = vpop.f32.mrb[0].mxu0
        %v1588 = vpop.f32.mrb[0].mxu0
        %1589 = vdwg.mxu0
        %v1590 = vadd.f32 %v1500, %v1542
        %v1591 = vadd.f32 %v1501, %v1585
        %1592 = vst.msk [vmem:[#allocation4] sm:$0xff] %vm988, %v1590
        %1593 = vst.msk [vmem:[#allocation4 + $0x8] sm:$0xff] %vm988, %v1591
        %p1594 = scmp.eq.s32.totalorder %s25, 1
        // Predicated region
        $region133: #{tpu_custom_call.1} parent=119 // pred_check
          %p1595 = pneg %p1594
        $region134: #{tpu_custom_call.1} parent=119 // pred_check_branch
          %1597 = sbr.rel (%p1595) target = $region136
        $region135: #{tpu_custom_call.1} parent=119 // pred_region
          %v1598 = vld [vmem:[#allocation3] sm:$0xff]
          %v1599 = vld [vmem:[#allocation3 + $0x8] sm:$0xff]
          %v1600 = vld [vmem:[#allocation3 + $0x10] sm:$0xff]
          %v1601 = vld [vmem:[#allocation3 + $0x18] sm:$0xff]
          %v1602 = vld [vmem:[#allocation3 + $0x20] sm:$0xff]
          %v1603 = vld [vmem:[#allocation3 + $0x28] sm:$0xff]
          %v1604 = vld [vmem:[#allocation3 + $0x30] sm:$0xff]
          %v1605 = vld [vmem:[#allocation3 + $0x38] sm:$0xff]
          %v1606 = vld [vmem:[#allocation3 + $0x40] sm:$0xff]
          %v1607 = vld [vmem:[#allocation3 + $0x48] sm:$0xff]
          %v1608 = vld [vmem:[#allocation4] sm:$0xff]
          %v1609 = vld [vmem:[#allocation4 + $0x8] sm:$0xff]
          %v1610 = vpack.c.bf16 %v1603, %v1598
          %v1611 = vpack.c.bf16 %v1604, %v1599
          %v1612 = vpack.c.bf16 %v1605, %v1600
          %v1613 = vpack.c.bf16 %v1606, %v1601
          %v1614 = vpack.c.bf16 %v1607, %v1602
          %v1615 = vld [vmem:[%s6] sm:$0xff]
          %v1616 = vld [vmem:[%s6 + $0x8] sm:$0xff]
          %v1617 = vld [vmem:[%s6 + $0x10] sm:$0xff]
          %v1618 = vld [vmem:[%s6 + $0x18] sm:$0xff]
          %v1619 = vld [vmem:[%s6 + $0x20] sm:$0xff]
          %v1620 = vld [vmem:[%s6 + $0x28] sm:$0xff]
          %v1621 = vld [vmem:[%s6 + $0x30] sm:$0xff]
          %v1622 = vld [vmem:[%s6 + $0x38] sm:$0xff]
          %v1623 = vld [vmem:[%s6 + $0x40] sm:$0xff]
          %v1624 = vld [vmem:[%s6 + $0x48] sm:$0xff]
          %v1625 = vld [vmem:[%s6 + $0x50] sm:$0xff]
          %v1626 = vld [vmem:[%s6 + $0x58] sm:$0xff]
          %v1627 = vld [vmem:[%s6 + $0x60] sm:$0xff]
          %v1628 = vld [vmem:[%s6 + $0x68] sm:$0xff]
          %v1629 = vld [vmem:[%s6 + $0x70] sm:$0xff]
          %v1630 = vld [vmem:[%s6 + $0x78] sm:$0xff]
          %v1631 = vld [vmem:[%s6 + $0x80] sm:$0xff]
          %v1632 = vld [vmem:[%s6 + $0x88] sm:$0xff]
          %v1633 = vld [vmem:[%s6 + $0x90] sm:$0xff]
          %v1634 = vld [vmem:[%s6 + $0x98] sm:$0xff]
          %v1635 = vld [vmem:[%s6 + $0xa0] sm:$0xff]
          %v1636 = vld [vmem:[%s6 + $0xa8] sm:$0xff]
          %v1637 = vld [vmem:[%s6 + $0xb0] sm:$0xff]
          %v1638 = vld [vmem:[%s6 + $0xb8] sm:$0xff]
          %v1639 = vld [vmem:[%s6 + $0xc0] sm:$0xff]
          %v1640 = vld [vmem:[%s6 + $0xc8] sm:$0xff]
          %v1641 = vld [vmem:[%s6 + $0xd0] sm:$0xff]
          %v1642 = vld [vmem:[%s6 + $0xd8] sm:$0xff]
          %v1643 = vld [vmem:[%s6 + $0xe0] sm:$0xff]
          %v1644 = vld [vmem:[%s6 + $0xe8] sm:$0xff]
          %v1645 = vld [vmem:[%s6 + $0xf0] sm:$0xff]
          %v1646 = vld [vmem:[%s6 + $0xf8] sm:$0xff]
          %v1647 = vld [vmem:[%s6 + $0x100] sm:$0xff]
          %v1648 = vld [vmem:[%s6 + $0x108] sm:$0xff]
          %v1649 = vld [vmem:[%s6 + $0x110] sm:$0xff]
          %v1650 = vld [vmem:[%s6 + $0x118] sm:$0xff]
          %v1651 = vld [vmem:[%s6 + $0x120] sm:$0xff]
          %v1652 = vld [vmem:[%s6 + $0x128] sm:$0xff]
          %v1653 = vld [vmem:[%s6 + $0x130] sm:$0xff]
          %v1654 = vld [vmem:[%s6 + $0x138] sm:$0xff]
          %v1655 = vld [vmem:[%s6 + $0x140] sm:$0xff]
          %v1656 = vld [vmem:[%s6 + $0x148] sm:$0xff]
          %v1657 = vld [vmem:[%s6 + $0x150] sm:$0xff]
          %v1658 = vld [vmem:[%s6 + $0x158] sm:$0xff]
          %v1659 = vld [vmem:[%s6 + $0x160] sm:$0xff]
          %v1660 = vld [vmem:[%s6 + $0x168] sm:$0xff]
          %v1661 = vld [vmem:[%s6 + $0x170] sm:$0xff]
          %v1662 = vld [vmem:[%s6 + $0x178] sm:$0xff]
          %v1663 = vld [vmem:[%s6 + $0x180] sm:$0xff]
          %v1664 = vld [vmem:[%s6 + $0x188] sm:$0xff]
          %v1665 = vld [vmem:[%s6 + $0x190] sm:$0xff]
          %v1666 = vld [vmem:[%s6 + $0x198] sm:$0xff]
          %v1667 = vld [vmem:[%s6 + $0x1a0] sm:$0xff]
          %v1668 = vld [vmem:[%s6 + $0x1a8] sm:$0xff]
          %v1669 = vld [vmem:[%s6 + $0x1b0] sm:$0xff]
          %v1670 = vld [vmem:[%s6 + $0x1b8] sm:$0xff]
          %v1671 = vld [vmem:[%s6 + $0x1c0] sm:$0xff]
          %v1672 = vld [vmem:[%s6 + $0x1c8] sm:$0xff]
          %v1673 = vld [vmem:[%s6 + $0x1d0] sm:$0xff]
          %v1674 = vld [vmem:[%s6 + $0x1d8] sm:$0xff]
          %v1675 = vld [vmem:[%s6 + $0x1e0] sm:$0xff]
          %v1676 = vld [vmem:[%s6 + $0x1e8] sm:$0xff]
          %v1677 = vld [vmem:[%s6 + $0x1f0] sm:$0xff]
          %v1678 = vld [vmem:[%s6 + $0x1f8] sm:$0xff]
          %v1679 = vld [vmem:[%s6 + $0x200] sm:$0xff]
          %v1680 = vld [vmem:[%s6 + $0x208] sm:$0xff]
          %v1681 = vld [vmem:[%s6 + $0x210] sm:$0xff]
          %v1682 = vld [vmem:[%s6 + $0x218] sm:$0xff]
          %v1683 = vld [vmem:[%s6 + $0x220] sm:$0xff]
          %v1684 = vld [vmem:[%s6 + $0x228] sm:$0xff]
          %v1685 = vld [vmem:[%s6 + $0x230] sm:$0xff]
          %v1686 = vld [vmem:[%s6 + $0x238] sm:$0xff]
          %v1687 = vld [vmem:[%s6 + $0x240] sm:$0xff]
          %v1688 = vld [vmem:[%s6 + $0x248] sm:$0xff]
          %v1689 = vld [vmem:[%s6 + $0x250] sm:$0xff]
          %v1690 = vld [vmem:[%s6 + $0x258] sm:$0xff]
          %v1691 = vld [vmem:[%s6 + $0x260] sm:$0xff]
          %v1692 = vld [vmem:[%s6 + $0x268] sm:$0xff]
          %v1693 = vld [vmem:[%s6 + $0x270] sm:$0xff]
          %v1694 = vld [vmem:[%s6 + $0x278] sm:$0xff]
          %v1695 = vpack.c.bf16 %v1616, %v1615
          %v1696 = vpack.c.bf16 %v1618, %v1617
          %v1697 = vpack.c.bf16 %v1620, %v1619
          %v1698 = vpack.c.bf16 %v1622, %v1621
          %v1699 = vpack.c.bf16 %v1624, %v1623
          %v1700 = vpack.c.bf16 %v1626, %v1625
          %v1701 = vpack.c.bf16 %v1628, %v1627
          %v1702 = vpack.c.bf16 %v1630, %v1629
          %v1703 = vpack.c.bf16 %v1632, %v1631
          %v1704 = vpack.c.bf16 %v1634, %v1633
          %v1705 = vpack.c.bf16 %v1636, %v1635
          %v1706 = vpack.c.bf16 %v1638, %v1637
          %v1707 = vpack.c.bf16 %v1640, %v1639
          %v1708 = vpack.c.bf16 %v1642, %v1641
          %v1709 = vpack.c.bf16 %v1644, %v1643
          %v1710 = vpack.c.bf16 %v1646, %v1645
          %v1711 = vpack.c.bf16 %v1648, %v1647
          %v1712 = vpack.c.bf16 %v1650, %v1649
          %v1713 = vpack.c.bf16 %v1652, %v1651
          %v1714 = vpack.c.bf16 %v1654, %v1653
          %v1715 = vpack.c.bf16 %v1656, %v1655
          %v1716 = vpack.c.bf16 %v1658, %v1657
          %v1717 = vpack.c.bf16 %v1660, %v1659
          %v1718 = vpack.c.bf16 %v1662, %v1661
          %v1719 = vpack.c.bf16 %v1664, %v1663
          %v1720 = vpack.c.bf16 %v1666, %v1665
          %v1721 = vpack.c.bf16 %v1668, %v1667
          %v1722 = vpack.c.bf16 %v1670, %v1669
          %v1723 = vpack.c.bf16 %v1672, %v1671
          %v1724 = vpack.c.bf16 %v1674, %v1673
          %v1725 = vpack.c.bf16 %v1676, %v1675
          %v1726 = vpack.c.bf16 %v1678, %v1677
          %v1727 = vpack.c.bf16 %v1680, %v1679
          %v1728 = vpack.c.bf16 %v1682, %v1681
          %v1729 = vpack.c.bf16 %v1684, %v1683
          %v1730 = vpack.c.bf16 %v1686, %v1685
          %v1731 = vpack.c.bf16 %v1688, %v1687
          %v1732 = vpack.c.bf16 %v1690, %v1689
          %v1733 = vpack.c.bf16 %v1692, %v1691
          %v1734 = vpack.c.bf16 %v1694, %v1693
          %v1735 = vpack.c.bf16 %v1609, %v1608
          %v1736 = vld [vmem:[%s7] sm:$0x1f]
          %v1737 = vpack.c.bf16 %v1736, %v1736
          %v1739 = vsel %vm988, %v1735, 0
          %v1742 = vand.u32 %v1737, %v995
          %1744 = vmatprep.subr.bf16.mxu0 0
          %1745 = vmatpush1.bf16.msra.mxu0 %v1742
          %1746 = vmatprep.subr.bf16.mxu0 0
          %1747 = vmatpush1.bf16.msra.mxu0 0
          %1748 = vmatprep.subr.bf16.mxu0 0
          %1749 = vmatpush1.bf16.msra.mxu0 0
          %1750 = vmatprep.subr.bf16.mxu0 0
          %1751 = vmatpush1.bf16.msra.mxu0 0
          %1752 = vmatprep.subr.bf16.mxu0 0
          %1753 = vmatpush1.bf16.msra.mxu0 0
          %1754 = vmatprep.subr.bf16.mxu0 0
          %1755 = vmatpush1.bf16.msra.mxu0 0
          %1756 = vmatprep.subr.bf16.mxu0 0
          %1757 = vmatpush1.bf16.msra.mxu0 0
          %1758 = vmatprep.subr.bf16.mxu0 0
          %1759 = vmatpush1.bf16.msra.mxu0 0
          %1760 = vmatprep.subr.bf16.mxu0 0
          %1761 = vmatpush1.bf16.msra.mxu0 0
          %1762 = vmatprep.subr.bf16.mxu0 0
          %1763 = vmatpush1.bf16.msra.mxu0 0
          %1764 = vmatprep.subr.bf16.mxu0 0
          %1765 = vmatpush1.bf16.msra.mxu0 0
          %1766 = vmatprep.subr.bf16.mxu0 0
          %1767 = vmatpush1.bf16.msra.mxu0 0
          %1768 = vmatprep.subr.bf16.mxu0 0
          %1769 = vmatpush1.bf16.msra.mxu0 0
          %1770 = vmatprep.subr.bf16.mxu0 0
          %1771 = vmatpush1.bf16.msra.mxu0 0
          %1772 = vmatprep.subr.bf16.mxu0 0
          %1773 = vmatpush1.bf16.msra.mxu0 0
          %1774 = vmatprep.subr.bf16.mxu0 0
          %1775 = vmatpush1.bf16.msra.mxu0 0
          %1776 = vmatprep.mubr.bf16.mxu0 0
          %1777 = vmatmul.mubr.bf16.gmra.mrb[0].mxu0 %v1739
          %v1778 = vpop.f32.mrb[0].mxu0
          %v1779 = vadd.f32 0.0, %v1778
          %v1780 = vpop.f32.mrb[0].mxu0
          %v1781 = vpop.f32.mrb[0].mxu0
          %v1782 = vadd.f32 0.0, %v1781
          %v1783 = vpop.f32.mrb[0].mxu0
          %1784 = vdwg.mxu0
          %1785 = vmatprep.subr.bf16.mxu0 0
          %1786 = vmatpush1.bf16.msra.mxu0 %v1695
          %1787 = vmatprep.subr.bf16.mxu0 0
          %1788 = vmatpush1.bf16.msra.mxu0 %v1696
          %1789 = vmatprep.subr.bf16.mxu0 0
          %1790 = vmatpush1.bf16.msra.mxu0 %v1697
          %1791 = vmatprep.subr.bf16.mxu0 0
          %1792 = vmatpush1.bf16.msra.mxu0 %v1698
          %1793 = vmatprep.subr.bf16.mxu0 0
          %1794 = vmatpush1.bf16.msra.mxu0 %v1699
          %1795 = vmatprep.subr.bf16.mxu0 0
          %1796 = vmatpush1.bf16.msra.mxu0 %v1700
          %1797 = vmatprep.subr.bf16.mxu0 0
          %1798 = vmatpush1.bf16.msra.mxu0 %v1701
          %1799 = vmatprep.subr.bf16.mxu0 0
          %1800 = vmatpush1.bf16.msra.mxu0 %v1702
          %1801 = vmatprep.subr.bf16.mxu0 0
          %1802 = vmatpush1.bf16.msra.mxu0 %v1703
          %1803 = vmatprep.subr.bf16.mxu0 0
          %1804 = vmatpush1.bf16.msra.mxu0 %v1704
          %1805 = vmatprep.subr.bf16.mxu0 0
          %1806 = vmatpush1.bf16.msra.mxu0 %v1705
          %1807 = vmatprep.subr.bf16.mxu0 0
          %1808 = vmatpush1.bf16.msra.mxu0 %v1706
          %1809 = vmatprep.subr.bf16.mxu0 0
          %1810 = vmatpush1.bf16.msra.mxu0 %v1707
          %1811 = vmatprep.subr.bf16.mxu0 0
          %1812 = vmatpush1.bf16.msra.mxu0 %v1708
          %1813 = vmatprep.subr.bf16.mxu0 0
          %1814 = vmatpush1.bf16.msra.mxu0 %v1709
          %1815 = vmatprep.subr.bf16.mxu0 0
          %1816 = vmatpush1.bf16.msra.mxu0 %v1710
          %1817 = vmatprep.mubr.bf16.mxu0 %v1611
          %1818 = vmatmul.mubr.bf16.gmra.mrb[0].mxu0 %v1610
          %v1819 = vpop.f32.mrb[0].mxu0
          %v1820 = vadd.f32 %v1779, %v1819
          %v1821 = vpop.f32.mrb[0].mxu0
          %v1822 = vpop.f32.mrb[0].mxu0
          %v1823 = vadd.f32 %v1782, %v1822
          %v1824 = vpop.f32.mrb[0].mxu0
          %1825 = vdwg.mxu0
          %1826 = vmatprep.subr.bf16.mxu0 0
          %1827 = vmatpush1.bf16.msra.mxu0 %v1711
          %1828 = vmatprep.subr.bf16.mxu0 0
          %1829 = vmatpush1.bf16.msra.mxu0 %v1712
          %1830 = vmatprep.subr.bf16.mxu0 0
          %1831 = vmatpush1.bf16.msra.mxu0 %v1713
          %1832 = vmatprep.subr.bf16.mxu0 0
          %1833 = vmatpush1.bf16.msra.mxu0 %v1714
          %1834 = vmatprep.subr.bf16.mxu0 0
          %1835 = vmatpush1.bf16.msra.mxu0 %v1715
          %1836 = vmatprep.subr.bf16.mxu0 0
          %1837 = vmatpush1.bf16.msra.mxu0 %v1716
          %1838 = vmatprep.subr.bf16.mxu0 0
          %1839 = vmatpush1.bf16.msra.mxu0 %v1717
          %1840 = vmatprep.subr.bf16.mxu0 0
          %1841 = vmatpush1.bf16.msra.mxu0 %v1718
          %1842 = vmatprep.subr.bf16.mxu0 0
          %1843 = vmatpush1.bf16.msra.mxu0 %v1719
          %1844 = vmatprep.subr.bf16.mxu0 0
          %1845 = vmatpush1.bf16.msra.mxu0 %v1720
          %1846 = vmatprep.subr.bf16.mxu0 0
          %1847 = vmatpush1.bf16.msra.mxu0 %v1721
          %1848 = vmatprep.subr.bf16.mxu0 0
          %1849 = vmatpush1.bf16.msra.mxu0 %v1722
          %1850 = vmatprep.subr.bf16.mxu0 0
          %1851 = vmatpush1.bf16.msra.mxu0 %v1723
          %1852 = vmatprep.subr.bf16.mxu0 0
          %1853 = vmatpush1.bf16.msra.mxu0 %v1724
          %1854 = vmatprep.subr.bf16.mxu0 0
          %1855 = vmatpush1.bf16.msra.mxu0 %v1725
          %1856 = vmatprep.subr.bf16.mxu0 0
          %1857 = vmatpush1.bf16.msra.mxu0 %v1726
          %1858 = vmatprep.mubr.bf16.mxu0 %v1613
          %1859 = vmatmul.mubr.bf16.gmra.mrb[0].mxu0 %v1612
          %v1860 = vpop.f32.mrb[0].mxu0
          %v1861 = vadd.f32 %v1820, %v1860
          %v1862 = vpop.f32.mrb[0].mxu0
          %v1863 = vpop.f32.mrb[0].mxu0
          %v1864 = vadd.f32 %v1823, %v1863
          %v1865 = vpop.f32.mrb[0].mxu0
          %1866 = vdwg.mxu0
          %1867 = vmatprep.subr.bf16.mxu0 0
          %1868 = vmatpush1.bf16.msra.mxu0 %v1727
          %1869 = vmatprep.subr.bf16.mxu0 0
          %1870 = vmatpush1.bf16.msra.mxu0 %v1728
          %1871 = vmatprep.subr.bf16.mxu0 0
          %1872 = vmatpush1.bf16.msra.mxu0 %v1729
          %1873 = vmatprep.subr.bf16.mxu0 0
          %1874 = vmatpush1.bf16.msra.mxu0 %v1730
          %1875 = vmatprep.subr.bf16.mxu0 0
          %1876 = vmatpush1.bf16.msra.mxu0 %v1731
          %1877 = vmatprep.subr.bf16.mxu0 0
          %1878 = vmatpush1.bf16.msra.mxu0 %v1732
          %1879 = vmatprep.subr.bf16.mxu0 0
          %1880 = vmatpush1.bf16.msra.mxu0 %v1733
          %1881 = vmatprep.subr.bf16.mxu0 0
          %1882 = vmatpush1.bf16.msra.mxu0 %v1734
          %1883 = vmatprep.subr.bf16.mxu0 0
          %1884 = vmatpush1.bf16.msra.mxu0 0
          %1885 = vmatprep.subr.bf16.mxu0 0
          %1886 = vmatpush1.bf16.msra.mxu0 0
          %1887 = vmatprep.subr.bf16.mxu0 0
          %1888 = vmatpush1.bf16.msra.mxu0 0
          %1889 = vmatprep.subr.bf16.mxu0 0
          %1890 = vmatpush1.bf16.msra.mxu0 0
          %1891 = vmatprep.subr.bf16.mxu0 0
          %1892 = vmatpush1.bf16.msra.mxu0 0
          %1893 = vmatprep.subr.bf16.mxu0 0
          %1894 = vmatpush1.bf16.msra.mxu0 0
          %1895 = vmatprep.subr.bf16.mxu0 0
          %1896 = vmatpush1.bf16.msra.mxu0 0
          %1897 = vmatprep.subr.bf16.mxu0 0
          %1898 = vmatpush1.bf16.msra.mxu0 0
          %1899 = vmatprep.mubr.bf16.mxu0 0
          %1900 = vmatmul.mubr.bf16.gmra.mrb[0].mxu0 %v1614
          %v1901 = vpop.f32.mrb[0].mxu0
          %v1902 = vadd.f32 %v1861, %v1901
          %v1903 = vpop.f32.mrb[0].mxu0
          %v1904 = vpop.f32.mrb[0].mxu0
          %v1905 = vadd.f32 %v1864, %v1904
          %v1906 = vpop.f32.mrb[0].mxu0
          %1907 = vdwg.mxu0
          %v1908 = vlaneseq
          %vm1909 = vcmp.ge.s32.totalorder %v1908, 0
          %vm1910 = vcmp.lt.s32.totalorder %v1908, 32
          %vm1911 = vmand %vm1909, %vm1910
          %1912 = vst.msk [vmem:[#allocation7] sm:$0x1] %vm1911, %v1902
          %1913 = vst.msk [vmem:[#allocation7 + $0x2] sm:$0x1] %vm1911, %v1905
          %v1917 = vunpack.c.l.s4 1966171168
          %v1918 = vunpack.c.0.s8 %v1917
          %v1919 = vlaneseq
          %v1920 = vshrl.u32 %v1919, 7
          %v1921 = vsub.s32 %v1918, %v1920
          %v1922 = vrot.slane %v1902, %v1921
          %v1923 = vcombine.high %v1922, %v1922
          %v1925 = vunpack.c.l.s4 1966171168
          %v1926 = vunpack.c.0.s8 %v1925
          %v1927 = vlaneseq
          %v1928 = vshrl.u32 %v1927, 7
          %v1929 = vsub.s32 %v1926, %v1928
          %v1930 = vrot.slane %v1922, %v1929
          %v1932 = vunpack.c.l.s4 1966171168
          %v1933 = vunpack.c.0.s8 %v1932
          %v1934 = vlaneseq
          %v1935 = vshrl.u32 %v1934, 7
          %v1936 = vsub.s32 %v1933, %v1935
          %v1937 = vrot.slane %v1923, %v1936
          %v1939 = vunpack.c.l.s4 1966171168
          %v1940 = vunpack.c.0.s8 %v1939
          %v1941 = vlaneseq
          %v1942 = vshrl.u32 %v1941, 7
          %v1943 = vsub.s32 %v1940, %v1942
          %v1944 = vrot.slane %v1905, %v1943
          %v1945 = vcombine.high %v1944, %v1944
          %v1947 = vunpack.c.l.s4 1966171168
          %v1948 = vunpack.c.0.s8 %v1947
          %v1949 = vlaneseq
          %v1950 = vshrl.u32 %v1949, 7
          %v1951 = vsub.s32 %v1948, %v1950
          %v1952 = vrot.slane %v1944, %v1951
          %v1954 = vunpack.c.l.s4 1966171168
          %v1955 = vunpack.c.0.s8 %v1954
          %v1956 = vlaneseq
          %v1957 = vshrl.u32 %v1956, 7
          %v1958 = vsub.s32 %v1955, %v1957
          %v1959 = vrot.slane %v1945, %v1958
          %1960 = vrot.lane.b32.xlu0 %v1937, 32
          %v1961 = vpop.permute.xlu0 %1960
          %1962 = vrot.lane.b32.xlu0 %v1959, 32
          %v1963 = vpop.permute.xlu0 %1962
          %vm1966 = vcmp.ge.s32.totalorder %v1908, 32
          %vm1967 = vcmp.lt.s32.totalorder %v1908, 64
          %vm1968 = vmand %vm1966, %vm1967
          %1969 = vst.msk [vmem:[#allocation7] sm:$0x1] %vm1968, %v1961
          %1970 = vst.msk [vmem:[#allocation7 + $0x2] sm:$0x1] %vm1968, %v1963
          %v1971 = vcombine.high %v1930, %v1930
          %v1972 = vcombine.high %v1952, %v1952
          %1973 = vrot.lane.b32.xlu0 %v1971, 64
          %v1974 = vpop.permute.xlu0 %1973
          %1975 = vrot.lane.b32.xlu0 %v1972, 64
          %v1976 = vpop.permute.xlu0 %1975
          %vm1979 = vcmp.ge.s32.totalorder %v1908, 64
          %vm1980 = vcmp.lt.s32.totalorder %v1908, 96
          %vm1981 = vmand %vm1979, %vm1980
          %1982 = vst.msk [vmem:[#allocation7] sm:$0x1] %vm1981, %v1974
          %1983 = vst.msk [vmem:[#allocation7 + $0x2] sm:$0x1] %vm1981, %v1976
          %v1984 = vcombine.high %v1937, %v1937
          %v1985 = vcombine.high %v1959, %v1959
          %1986 = vrot.lane.b32.xlu0 %v1984, 96
          %v1987 = vpop.permute.xlu0 %1986
          %1988 = vrot.lane.b32.xlu0 %v1985, 96
          %v1989 = vpop.permute.xlu0 %1988
          %vm1992 = vcmp.ge.s32.totalorder %v1908, 96
          %vm1993 = vcmp.lt.s32.totalorder %v1908, 128
          %vm1994 = vmand %vm1992, %vm1993
          %1995 = vst.msk [vmem:[#allocation7] sm:$0x1] %vm1994, %v1987
          %1996 = vst.msk [vmem:[#allocation7 + $0x2] sm:$0x1] %vm1994, %v1989
          %v1997 = vcombine.high %v1902, %v1902
          %v1999 = vunpack.c.l.s4 1966171168
          %v2000 = vunpack.c.0.s8 %v1999
          %v2001 = vlaneseq
          %v2002 = vshrl.u32 %v2001, 7
          %v2003 = vsub.s32 %v2000, %v2002
          %v2004 = vrot.slane %v1997, %v2003
          %v2006 = vunpack.c.l.s4 1966171168
          %v2007 = vunpack.c.0.s8 %v2006
          %v2008 = vlaneseq
          %v2009 = vshrl.u32 %v2008, 7
          %v2010 = vsub.s32 %v2007, %v2009
          %v2011 = vrot.slane %v2004, %v2010
          %v2012 = vcombine.high %v1905, %v1905
          %v2014 = vunpack.c.l.s4 1966171168
          %v2015 = vunpack.c.0.s8 %v2014
          %v2016 = vlaneseq
          %v2017 = vshrl.u32 %v2016, 7
          %v2018 = vsub.s32 %v2015, %v2017
          %v2019 = vrot.slane %v2012, %v2018
          %v2021 = vunpack.c.l.s4 1966171168
          %v2022 = vunpack.c.0.s8 %v2021
          %v2023 = vlaneseq
          %v2024 = vshrl.u32 %v2023, 7
          %v2025 = vsub.s32 %v2022, %v2024
          %v2026 = vrot.slane %v2019, %v2025
          %2029 = vst.msk [vmem:[#allocation7 + $0x1] sm:$0x1] %vm1911, %v2011
          %2030 = vst.msk [vmem:[#allocation7 + $0x3] sm:$0x1] %vm1911, %v2026
          %v2031 = vcombine.high %v2004, %v2004
          %v2033 = vunpack.c.l.s4 1966171168
          %v2034 = vunpack.c.0.s8 %v2033
          %v2035 = vlaneseq
          %v2036 = vshrl.u32 %v2035, 7
          %v2037 = vsub.s32 %v2034, %v2036
          %v2038 = vrot.slane %v2031, %v2037
          %v2039 = vcombine.high %v2019, %v2019
          %v2041 = vunpack.c.l.s4 1966171168
          %v2042 = vunpack.c.0.s8 %v2041
          %v2043 = vlaneseq
          %v2044 = vshrl.u32 %v2043, 7
          %v2045 = vsub.s32 %v2042, %v2044
          %v2046 = vrot.slane %v2039, %v2045
          %2047 = vrot.lane.b32.xlu0 %v2038, 32
          %v2048 = vpop.permute.xlu0 %2047
          %2049 = vrot.lane.b32.xlu0 %v2046, 32
          %v2050 = vpop.permute.xlu0 %2049
          %2053 = vst.msk [vmem:[#allocation7 + $0x1] sm:$0x1] %vm1968, %v2048
          %2054 = vst.msk [vmem:[#allocation7 + $0x3] sm:$0x1] %vm1968, %v2050
          %v2055 = vcombine.high %v2011, %v2011
          %v2056 = vcombine.high %v2026, %v2026
          %2057 = vrot.lane.b32.xlu0 %v2055, 64
          %v2058 = vpop.permute.xlu0 %2057
          %2059 = vrot.lane.b32.xlu0 %v2056, 64
          %v2060 = vpop.permute.xlu0 %2059
          %2063 = vst.msk [vmem:[#allocation7 + $0x1] sm:$0x1] %vm1981, %v2058
          %2064 = vst.msk [vmem:[#allocation7 + $0x3] sm:$0x1] %vm1981, %v2060
          %v2065 = vcombine.high %v2038, %v2038
          %v2066 = vcombine.high %v2046, %v2046
          %2067 = vrot.lane.b32.xlu0 %v2065, 96
          %v2068 = vpop.permute.xlu0 %2067
          %2069 = vrot.lane.b32.xlu0 %v2066, 96
          %v2070 = vpop.permute.xlu0 %2069
          %2073 = vst.msk [vmem:[#allocation7 + $0x1] sm:$0x1] %vm1994, %v2068
          %2074 = vst.msk [vmem:[#allocation7 + $0x3] sm:$0x1] %vm1994, %v2070
        $region136: #{tpu_custom_call.1} parent=119 // pred_fallthru
          _
        // Predicated region
        $region137: #{tpu_custom_call.1} parent=119 // pred_check
          %p2075 = pneg %p237
        $region138: #{tpu_custom_call.1} parent=119 // pred_check_branch
          %2077 = sbr.rel (%p2075) target = $region140
        $region139: #{tpu_custom_call.1} parent=119 // pred_region
          %s2078 = smul.u32 2, %s24
          %s2080 = ssub.s32 64, 64
          %2081 = vsyncadd [#allocation8], %s2080
          %s2082 = smul.addr %s2078, 2
          %s2083 = smul.addr %s2082, 16
          %s2084 = scalar_lea.hbm %s8, %s2083
          %s2085 = sshll.u32 [#allocation7], 4
          %s2086 = int_to_ptr.vmem [resolvable:$true] %s2085
          %2091 = dma.vmem_to_hbm [thread:$0]  %s2086, 64, %s2084, [#allocation8], 32, 32, 2
        $region140: #{tpu_custom_call.1} parent=119 // pred_fallthru
          _
        // Predicated region
        $region141: #{tpu_custom_call.1} parent=119 // pred_check
          %p2092 = pneg %p237
        $region142: #{tpu_custom_call.1} parent=119 // pred_check_branch
          %2094 = sbr.rel (%p2092) target = $region144
        $region143: #{tpu_custom_call.1} parent=119 // pred_region
          %2095 = dma.done [#allocation8], 64
        $region144: #{tpu_custom_call.1} parent=119 // pred_fallthru
          _
      $region120: #{tpu_custom_call.1} parent=5 // pred_fallthru
        _
      %p2096 = scmp.le.s32.totalorder 2, %s15
      // Predicated region
      $region145: #{tpu_custom_call.1} parent=5 // pred_check
        %p2097 = pneg %p2096
      $region146: #{tpu_custom_call.1} parent=5 // pred_check_branch
        %2099 = sbr.rel (%p2097) target = $region148
      $region147: #{tpu_custom_call.1} parent=5 // pred_region
        %s2100 = ssub.s32 %s15, 2
      $region148: #{tpu_custom_call.1} parent=5 // pred_fallthru
        _
    $region6: #{tpu_custom_call.1} parent=1 // loop_footer
      %s19 = sadd.s32 1, %s15
    $region7: #{tpu_custom_call.1} parent=1 // loop_footer_branch
      %14 = sbr.rel target = $region3
    $region8: #{tpu_custom_call.1} parent=1 // loop_exit
      _
    %2101 = vsyncpa [#allocation8], 1
    %s2102 = scalar_lea.sflag [#allocation8], 1
    %2103 = vsyncpa %s2102, 1

</llo_original>
